<compile_context>
chip_gen: v5e
topology: v5e:2x2
jax: 0.10.0
libtpu: 0.0.40
codegen_flags: <defaults>
</compile_context>

<pallas_src>
import math

import jax
import jax.numpy as jnp
from jax import lax
from jax.experimental import pallas as pl
from jax.experimental.pallas import tpu as pltpu

POST_DIM = 64          # model dim, divisible by NUM_HEADS
ACCOUNT_DIM = 32
NUM_HEADS = 8
HEAD_DIM = POST_DIM // NUM_HEADS


def attention_pool_kernel(x_ref, m_ref, hs_ref, wq_ref, wk_ref, wv_ref,
                          bq_ref, bk_ref, bv_ref, wo_ref, bo_ref, lng_ref,
                          lnb_ref, sc_ref, w1_ref, b1_ref, w2_ref, b2_ref,
                          o_ref):
    D = POST_DIM
    TB, S, _ = x_ref.shape
    M = TB * S

    # ---- hoisted parameter loads (read once, reused; no re-broadcasts) ----
    headsum = hs_ref[...]         # (D, D) bf16 block-diagonal ones (head groups)
    wq = wq_ref[...]              # (D, D) bf16, 1/sqrt(HEAD_DIM) pre-folded
    wk = wk_ref[...]              # (D, D) bf16
    wv = wv_ref[...]              # (D, D) bf16
    bq = bq_ref[...]              # (1, D) f32, scale pre-folded
    bk = bk_ref[...]              # (1, D)
    bv = bv_ref[...]              # (1, D)
    wo = wo_ref[...]              # (D, D)
    bo = bo_ref[...]              # (1, D)
    ln_g = lng_ref[...]           # (1, D)
    ln_b = lnb_ref[...]           # (1, D)
    sc_w = sc_ref[...]            # (1, D)
    w1 = w1_ref[...]              # (D, 2A)
    b1 = b1_ref[...]              # (1, 2A)
    w2 = w2_ref[...]              # (2A, A)
    b2 = b2_ref[...]              # (1, A)

    # x streams in as bf16; upcast immediately so all VPU/EUP math is f32
    # (v5e has no bf16 VPU/EUP).
    x = x_ref[...].astype(jnp.float32).reshape(M, D)          # (M, D)
    mvalid = m_ref[...] != 0.0                                 # (TB, S) bool

    # ---- x = F.normalize(x, p=2, dim=-1)  (rsqrt, no divide) ----
    sumsq = jnp.sum(x * x, axis=-1, keepdims=True)
    xn = x * lax.rsqrt(jnp.maximum(sumsq, 1e-24))              # (M, D)

    # ---- Q/K/V: three aligned (M,64)@(64,64) bf16 matmuls (f32 acc) ----
    xn_bf = xn.astype(jnp.bfloat16)
    q3 = (jnp.dot(xn_bf, wq, preferred_element_type=jnp.float32) + bq
          ).reshape(TB, S, D)
    k3 = (jnp.dot(xn_bf, wk, preferred_element_type=jnp.float32) + bk
          ).reshape(TB, S, D)
    v3 = (jnp.dot(xn_bf, wv, preferred_element_type=jnp.float32) + bv
          ).reshape(TB, S, D)

    # ---- 8-head self-attention without a per-head loop / tiny matmuls ----
    # prod[b, q, k, d] = q[b, q, d] * k[b, k, d]
    prod = q3[:, :, None, :] * k3[:, None, :, :]               # (TB, S, S, D) f32
    # per-head segment sum over d, replicated back onto each head's 8 lanes:
    #   scores[b, q, k, h*HD + d] = sum_{d' in head h} prod[b, q, k, d']
    # bf16 MXU pass; headsum is 0/1 so the reduction itself stays exact.
    scores = jnp.dot(prod.reshape(TB * S * S, D).astype(jnp.bfloat16), headsum,
                     preferred_element_type=jnp.float32).reshape(TB, S, S, D)
    # key-padding mask (additive -1e30 on padded keys)
    kmask = jnp.where(mvalid, 0.0, -1e30).astype(jnp.float32)  # (TB, S)
    scores = scores + kmask[:, None, :, None]

    # deferred-normalization softmax over keys (axis=2)
    smax = jnp.max(scores, axis=2, keepdims=True)
    e = jnp.exp(scores - smax)                                 # (TB, S, S, D)
    denom = jnp.sum(e, axis=2)                                 # (TB, S, D)
    attn_raw = jnp.sum(e * v3[:, None, :, :], axis=2)          # (TB, S, D)
    attn = attn_raw * pl.reciprocal(denom, approx=True)        # (TB, S, D)

    attn = jnp.dot(attn.reshape(M, D), wo,
                   preferred_element_type=jnp.float32) + bo    # (M, D)

    # ---- LayerNorm(xn + attn), eps = 1e-5 ----
    hres = xn + attn
    mu = jnp.mean(hres, axis=-1, keepdims=True)
    cen = hres - mu
    var = jnp.mean(cen * cen, axis=-1, keepdims=True)
    xl = cen * lax.rsqrt(var + 1e-5) * ln_g + ln_b             # (M, D)
    xl3 = xl.reshape(TB, S, D)

    # ---- w = softmax(sc(x).squeeze(-1).masked_fill(m==0, -1e9), -1) ----
    # lane-wise multiply + sublane reductions; normalization deferred.
    logits = jnp.sum(xl3 * sc_w, axis=-1)                      # (TB, S)
    logits = jnp.where(mvalid, logits, -1000000000.0)
    lmax = jnp.max(logits, axis=-1, keepdims=True)
    ew = jnp.exp(logits - lmax)                                # (TB, S)

    # ---- v = (x * w.unsqueeze(-1)).sum(1)  (normalize once on the pooled vec) ----
    pooled = jnp.sum(xl3 * ew[:, :, None], axis=1)             # (TB, D)
    pooled = pooled * pl.reciprocal(jnp.sum(ew, axis=-1, keepdims=True),
                                    approx=True)

    # ---- proj: Linear -> GELU(exact erf) -> Linear ----
    h1 = jnp.dot(pooled, w1, preferred_element_type=jnp.float32) + b1
    h1 = 0.5 * h1 * (1.0 + lax.erf(h1 * (1.0 / math.sqrt(2.0))))
    h2 = jnp.dot(h1, w2, preferred_element_type=jnp.float32) + b2   # (TB, A)

    # ---- F.normalize(proj(v), p=2, dim=-1) ----
    n2sq = jnp.sum(h2 * h2, axis=-1, keepdims=True)
    o_ref[...] = (h2 * lax.rsqrt(jnp.maximum(n2sq, 1e-24))).astype(o_ref.dtype)


def attention_pool(x, m, params, *, block_b=128):
    """x: (B, S, POST_DIM); m: (B, S) with 0 = padded token. Returns (B, ACCOUNT_DIM)."""
    B, S, D = x.shape
    assert D == POST_DIM
    A = ACCOUNT_DIM

    # Block size: TB=128 keeps f32 temporaries (~10-12 MiB) comfortably inside
    # v7x's 64 MiB VMEM; on v5e/v6e (128 MiB) block_b=256-512 is also fine.
    tb = max(1, min(block_b, B))
    n_blocks = -(-B // tb)
    if n_blocks == 1 and B >= 16:
        # v7x megacore: give each of the 2 TensorCores a block (8-aligned so
        # the (tb, S)/(tb, A) BlockSpecs stay sublane-legal).
        tb = ((B + 1) // 2 + 7) // 8 * 8
        n_blocks = -(-B // tb)
    b_pad = n_blocks * tb
    if b_pad != B:
        # zero rows with all-valid mask: finite everywhere, sliced off below.
        x = jnp.concatenate([x, jnp.zeros((b_pad - B, S, D), x.dtype)], axis=0)
        m = jnp.concatenate([m, jnp.ones((b_pad - B, S), m.dtype)], axis=0)

    # bf16 streaming input (halves HBM traffic); all elementwise math is f32 in-kernel.
    x_in = x.astype(jnp.bfloat16)
    m_in = m.astype(jnp.float32)

    scale = 1.0 / math.sqrt(HEAD_DIM)
    wqkv = params["wqkv"].astype(jnp.float32)            # (3D, D) PyTorch layout
    bqkv = params["bqkv"].astype(jnp.float32)            # (1, 3D)
    # Split + pre-transpose once on the host; fold the 1/sqrt(HEAD_DIM) scale
    # into the Q weight/bias; bf16 weights for the MXU (f32 accumulation).
    wq_t = (wqkv[0:D] * scale).T.astype(jnp.bfloat16)    # (D, D)
    wk_t = wqkv[D:2 * D].T.astype(jnp.bfloat16)          # (D, D)
    wv_t = wqkv[2 * D:3 * D].T.astype(jnp.bfloat16)      # (D, D)
    bq = (bqkv[:, 0:D] * scale).astype(jnp.float32)
    bk = bqkv[:, D:2 * D].astype(jnp.float32)
    bv = bqkv[:, 2 * D:3 * D].astype(jnp.float32)

    wo_t = params["wo"].T.astype(jnp.float32)            # (D, D)
    w1_t = params["w1"].T.astype(jnp.float32)            # (D, 2A)
    w2_t = params["w2"].T.astype(jnp.float32)            # (2A, A)

    # (D, D) block-diagonal ones: headsum[i, j] = 1 iff i and j are in the
    # same attention head (segment-sum-and-replicate matrix). 0/1 -> exact in bf16.
    hidx = jnp.arange(D, dtype=jnp.int32) // HEAD_DIM
    headsum = (hidx[:, None] == hidx[None, :]).astype(jnp.bfloat16)

    operands = (
        x_in, m_in, headsum, wq_t, wk_t, wv_t, bq, bk, bv,
        wo_t, params["bo"].astype(jnp.float32),
        params["ln_g"].astype(jnp.float32),
        params["ln_b"].astype(jnp.float32),
        params["sc_w"].astype(jnp.float32),
        w1_t, params["b1"].astype(jnp.float32),
        w2_t, params["b2"].astype(jnp.float32),
    )

    def full_spec(arr):
        nd = arr.ndim
        return pl.BlockSpec(arr.shape, lambda i, _nd=nd: (0,) * _nd)

    in_specs = [
        pl.BlockSpec((tb, S, D), lambda i: (i, 0, 0)),   # x: TB rows per step
        pl.BlockSpec((tb, S), lambda i: (i, 0)),         # mask tile
    ] + [full_spec(op) for op in operands[2:]]

    out = pl.pallas_call(
        attention_pool_kernel,
        out_shape=jax.ShapeDtypeStruct((b_pad, A), jnp.float32),
        grid=(n_blocks,),
        in_specs=in_specs,
        out_specs=pl.BlockSpec((tb, A), lambda i: (i, 0)),
        compiler_params=pltpu.CompilerParams(
            dimension_semantics=("parallel",),
            vmem_limit_bytes=32 * 1024 * 1024),
    )(*operands)
    return out[:B]


if __name__ == "__main__":
    B, S, D, A = 2, 8, POST_DIM, ACCOUNT_DIM
    key = jax.random.PRNGKey(0)
    ks = jax.random.split(key, 12)

    def rnd(k, shape, scale=0.1):
        return scale * jax.random.normal(k, shape, dtype=jnp.float32)

    # Deterministic synthetic parameters (PyTorch layouts: (out_feat, in_feat)).
    params = {
        "wqkv": rnd(ks[0], (3 * D, D)),      # MHA in_proj_weight
        "bqkv": rnd(ks[1], (1, 3 * D)),      # MHA in_proj_bias
        "wo":   rnd(ks[2], (D, D)),          # MHA out_proj.weight
        "bo":   rnd(ks[3], (1, D)),          # MHA out_proj.bias
        "ln_g": jnp.ones((1, D), jnp.float32),
        "ln_b": jnp.zeros((1, D), jnp.float32),
        "sc_w": rnd(ks[4], (1, D)),          # sc: Linear(D, 1, bias=False)
        "w1":   rnd(ks[5], (2 * A, D)),      # proj[0]
        "b1":   rnd(ks[6], (1, 2 * A)),
        "w2":   rnd(ks[7], (A, 2 * A)),      # proj[2]
        "b2":   rnd(ks[8], (1, A)),
    }

    x = jax.random.normal(ks[9], (B, S, D), dtype=jnp.float32)
    m = (jax.random.uniform(ks[10], (B, S)) > 0.3).astype(jnp.float32)
    m = m.at[:, 0].set(1.0)   # guarantee >=1 valid token per row

    out = attention_pool(x, m, params)
    out = jax.block_until_ready(out)
    assert out.shape == (B, A)
    assert bool(jnp.all(jnp.isfinite(out)))
    print("KERNEL_OK")
</pallas_src>

<mosaic_0001>
module attributes {stable_mosaic.version = 11 : i64} {
  func.func @attention_pool_kernel(%arg0: i32, %arg1: memref<2x8x64xbf16, #tpu.memory_space<vmem>>, %arg2: memref<2x8xf32, #tpu.memory_space<vmem>>, %arg3: memref<64x64xbf16, #tpu.memory_space<vmem>>, %arg4: memref<64x64xbf16, #tpu.memory_space<vmem>>, %arg5: memref<64x64xbf16, #tpu.memory_space<vmem>>, %arg6: memref<64x64xbf16, #tpu.memory_space<vmem>>, %arg7: memref<1x64xf32, #tpu.memory_space<vmem>>, %arg8: memref<1x64xf32, #tpu.memory_space<vmem>>, %arg9: memref<1x64xf32, #tpu.memory_space<vmem>>, %arg10: memref<64x64xf32, #tpu.memory_space<vmem>>, %arg11: memref<1x64xf32, #tpu.memory_space<vmem>>, %arg12: memref<1x64xf32, #tpu.memory_space<vmem>>, %arg13: memref<1x64xf32, #tpu.memory_space<vmem>>, %arg14: memref<1x64xf32, #tpu.memory_space<vmem>>, %arg15: memref<64x64xf32, #tpu.memory_space<vmem>>, %arg16: memref<1x64xf32, #tpu.memory_space<vmem>>, %arg17: memref<64x32xf32, #tpu.memory_space<vmem>>, %arg18: memref<1x32xf32, #tpu.memory_space<vmem>>, %arg19: memref<2x32xf32, #tpu.memory_space<vmem>>) attributes {dimension_semantics = [#tpu.dimension_semantics<parallel>], iteration_bounds = array<i64: 1>, scalar_prefetch = 0 : i64, scratch_operands = 0 : i64, tpu.core_type = #tpu.core_type<tc>, window_params = [{transform_indices = @transform_0, window_bounds = array<i64: 2, 8, 64>}, {transform_indices = @transform_1, window_bounds = array<i64: 2, 8>}, {pipeline_mode = #tpu.pipeline_mode<synchronous>, transform_indices = @transform_2, window_bounds = array<i64: 64, 64>}, {pipeline_mode = #tpu.pipeline_mode<synchronous>, transform_indices = @transform_3, window_bounds = array<i64: 64, 64>}, {pipeline_mode = #tpu.pipeline_mode<synchronous>, transform_indices = @transform_4, window_bounds = array<i64: 64, 64>}, {pipeline_mode = #tpu.pipeline_mode<synchronous>, transform_indices = @transform_5, window_bounds = array<i64: 64, 64>}, {pipeline_mode = #tpu.pipeline_mode<synchronous>, transform_indices = @transform_6, window_bounds = array<i64: 1, 64>}, {pipeline_mode = #tpu.pipeline_mode<synchronous>, transform_indices = @transform_7, window_bounds = array<i64: 1, 64>}, {pipeline_mode = #tpu.pipeline_mode<synchronous>, transform_indices = @transform_8, window_bounds = array<i64: 1, 64>}, {pipeline_mode = #tpu.pipeline_mode<synchronous>, transform_indices = @transform_9, window_bounds = array<i64: 64, 64>}, {pipeline_mode = #tpu.pipeline_mode<synchronous>, transform_indices = @transform_10, window_bounds = array<i64: 1, 64>}, {pipeline_mode = #tpu.pipeline_mode<synchronous>, transform_indices = @transform_11, window_bounds = array<i64: 1, 64>}, {pipeline_mode = #tpu.pipeline_mode<synchronous>, transform_indices = @transform_12, window_bounds = array<i64: 1, 64>}, {pipeline_mode = #tpu.pipeline_mode<synchronous>, transform_indices = @transform_13, window_bounds = array<i64: 1, 64>}, {pipeline_mode = #tpu.pipeline_mode<synchronous>, transform_indices = @transform_14, window_bounds = array<i64: 64, 64>}, {pipeline_mode = #tpu.pipeline_mode<synchronous>, transform_indices = @transform_15, window_bounds = array<i64: 1, 64>}, {pipeline_mode = #tpu.pipeline_mode<synchronous>, transform_indices = @transform_16, window_bounds = array<i64: 64, 32>}, {pipeline_mode = #tpu.pipeline_mode<synchronous>, transform_indices = @transform_17, window_bounds = array<i64: 1, 32>}, {transform_indices = @transform_18, window_bounds = array<i64: 2, 32>}]} {
    %c0 = arith.constant 0 : index
    %c0_0 = arith.constant 0 : index
    %0 = vector.load %arg3[%c0, %c0_0] : memref<64x64xbf16, #tpu.memory_space<vmem>>, vector<64x64xbf16>
    %c0_1 = arith.constant 0 : index
    %c0_2 = arith.constant 0 : index
    %1 = vector.load %arg4[%c0_1, %c0_2] : memref<64x64xbf16, #tpu.memory_space<vmem>>, vector<64x64xbf16>
    %c0_3 = arith.constant 0 : index
    %c0_4 = arith.constant 0 : index
    %2 = vector.load %arg5[%c0_3, %c0_4] : memref<64x64xbf16, #tpu.memory_space<vmem>>, vector<64x64xbf16>
    %c0_5 = arith.constant 0 : index
    %c0_6 = arith.constant 0 : index
    %3 = vector.load %arg6[%c0_5, %c0_6] : memref<64x64xbf16, #tpu.memory_space<vmem>>, vector<64x64xbf16>
    %c0_7 = arith.constant 0 : index
    %c0_8 = arith.constant 0 : index
    %4 = vector.load %arg7[%c0_7, %c0_8] : memref<1x64xf32, #tpu.memory_space<vmem>>, vector<1x64xf32>
    %c0_9 = arith.constant 0 : index
    %c0_10 = arith.constant 0 : index
    %5 = vector.load %arg8[%c0_9, %c0_10] : memref<1x64xf32, #tpu.memory_space<vmem>>, vector<1x64xf32>
    %c0_11 = arith.constant 0 : index
    %c0_12 = arith.constant 0 : index
    %6 = vector.load %arg9[%c0_11, %c0_12] : memref<1x64xf32, #tpu.memory_space<vmem>>, vector<1x64xf32>
    %c0_13 = arith.constant 0 : index
    %c0_14 = arith.constant 0 : index
    %7 = vector.load %arg10[%c0_13, %c0_14] : memref<64x64xf32, #tpu.memory_space<vmem>>, vector<64x64xf32>
    %c0_15 = arith.constant 0 : index
    %c0_16 = arith.constant 0 : index
    %8 = vector.load %arg11[%c0_15, %c0_16] : memref<1x64xf32, #tpu.memory_space<vmem>>, vector<1x64xf32>
    %c0_17 = arith.constant 0 : index
    %c0_18 = arith.constant 0 : index
    %9 = vector.load %arg12[%c0_17, %c0_18] : memref<1x64xf32, #tpu.memory_space<vmem>>, vector<1x64xf32>
    %c0_19 = arith.constant 0 : index
    %c0_20 = arith.constant 0 : index
    %10 = vector.load %arg13[%c0_19, %c0_20] : memref<1x64xf32, #tpu.memory_space<vmem>>, vector<1x64xf32>
    %c0_21 = arith.constant 0 : index
    %c0_22 = arith.constant 0 : index
    %11 = vector.load %arg14[%c0_21, %c0_22] : memref<1x64xf32, #tpu.memory_space<vmem>>, vector<1x64xf32>
    %c0_23 = arith.constant 0 : index
    %c0_24 = arith.constant 0 : index
    %12 = vector.load %arg15[%c0_23, %c0_24] : memref<64x64xf32, #tpu.memory_space<vmem>>, vector<64x64xf32>
    %c0_25 = arith.constant 0 : index
    %c0_26 = arith.constant 0 : index
    %13 = vector.load %arg16[%c0_25, %c0_26] : memref<1x64xf32, #tpu.memory_space<vmem>>, vector<1x64xf32>
    %c0_27 = arith.constant 0 : index
    %c0_28 = arith.constant 0 : index
    %14 = vector.load %arg17[%c0_27, %c0_28] : memref<64x32xf32, #tpu.memory_space<vmem>>, vector<64x32xf32>
    %c0_29 = arith.constant 0 : index
    %c0_30 = arith.constant 0 : index
    %15 = vector.load %arg18[%c0_29, %c0_30] : memref<1x32xf32, #tpu.memory_space<vmem>>, vector<1x32xf32>
    %c0_31 = arith.constant 0 : index
    %c0_32 = arith.constant 0 : index
    %c0_33 = arith.constant 0 : index
    %16 = vector.load %arg1[%c0_31, %c0_32, %c0_33] : memref<2x8x64xbf16, #tpu.memory_space<vmem>>, vector<2x8x64xbf16>
    %17 = arith.extf %16 : vector<2x8x64xbf16> to vector<2x8x64xf32>
    %18 = vector.shape_cast %17 : vector<2x8x64xf32> to vector<16x64xf32>
    %c0_34 = arith.constant 0 : index
    %c0_35 = arith.constant 0 : index
    %19 = vector.load %arg2[%c0_34, %c0_35] : memref<2x8xf32, #tpu.memory_space<vmem>>, vector<2x8xf32>
    %cst = arith.constant 0.000000e+00 : f32
    %20 = vector.broadcast %cst : f32 to vector<2x8xf32>
    %21 = arith.cmpf one, %19, %20 : vector<2x8xf32>
    %22 = arith.mulf %18, %18 : vector<16x64xf32>
    %cst_36 = arith.constant dense<0.000000e+00> : vector<16xf32>
    %23 = vector.multi_reduction <add>, %22, %cst_36 [1] : vector<16x64xf32> to vector<16xf32>
    %24 = vector.shape_cast %23 : vector<16xf32> to vector<16x1xf32>
    %cst_37 = arith.constant 1.000000e-24 : f32
    %25 = vector.broadcast %cst_37 : f32 to vector<16x1xf32>
    %26 = arith.maximumf %24, %25 : vector<16x1xf32>
    %27 = math.rsqrt %26 : vector<16x1xf32>
    %28 = vector.broadcast %27 : vector<16x1xf32> to vector<16x64xf32>
    %29 = arith.mulf %18, %28 : vector<16x64xf32>
    %30 = arith.truncf %29 : vector<16x64xf32> to vector<16x64xbf16>
    %cst_38 = arith.constant dense<0.000000e+00> : vector<16x64xf32>
    %31 = tpu.matmul %30, %1, %cst_38 {dimension_numbers = #tpu.dot_dimension_numbers<[1], [0], [0], [1], [0, 0, 1, 1], [], []>} : vector<16x64xbf16>, vector<64x64xbf16>, vector<16x64xf32> -> vector<16x64xf32>
    %32 = vector.broadcast %4 : vector<1x64xf32> to vector<16x64xf32>
    %33 = arith.addf %31, %32 : vector<16x64xf32>
    %34 = vector.shape_cast %33 : vector<16x64xf32> to vector<2x8x64xf32>
    %cst_39 = arith.constant dense<0.000000e+00> : vector<16x64xf32>
    %35 = tpu.matmul %30, %2, %cst_39 {dimension_numbers = #tpu.dot_dimension_numbers<[1], [0], [0], [1], [0, 0, 1, 1], [], []>} : vector<16x64xbf16>, vector<64x64xbf16>, vector<16x64xf32> -> vector<16x64xf32>
    %36 = vector.broadcast %5 : vector<1x64xf32> to vector<16x64xf32>
    %37 = arith.addf %35, %36 : vector<16x64xf32>
    %38 = vector.shape_cast %37 : vector<16x64xf32> to vector<2x8x64xf32>
    %cst_40 = arith.constant dense<0.000000e+00> : vector<16x64xf32>
    %39 = tpu.matmul %30, %3, %cst_40 {dimension_numbers = #tpu.dot_dimension_numbers<[1], [0], [0], [1], [0, 0, 1, 1], [], []>} : vector<16x64xbf16>, vector<64x64xbf16>, vector<16x64xf32> -> vector<16x64xf32>
    %40 = vector.broadcast %6 : vector<1x64xf32> to vector<16x64xf32>
    %41 = arith.addf %39, %40 : vector<16x64xf32>
    %42 = vector.shape_cast %41 : vector<16x64xf32> to vector<2x8x64xf32>
    %43 = vector.shape_cast %34 : vector<2x8x64xf32> to vector<2x8x1x64xf32>
    %44 = vector.shape_cast %38 : vector<2x8x64xf32> to vector<2x1x8x64xf32>
    %45 = vector.broadcast %43 : vector<2x8x1x64xf32> to vector<2x8x8x64xf32>
    %46 = vector.broadcast %44 : vector<2x1x8x64xf32> to vector<2x8x8x64xf32>
    %47 = arith.mulf %45, %46 : vector<2x8x8x64xf32>
    %48 = vector.shape_cast %47 : vector<2x8x8x64xf32> to vector<128x64xf32>
    %49 = arith.truncf %48 : vector<128x64xf32> to vector<128x64xbf16>
    %cst_41 = arith.constant dense<0.000000e+00> : vector<128x64xf32>
    %50 = tpu.matmul %49, %0, %cst_41 {dimension_numbers = #tpu.dot_dimension_numbers<[1], [0], [0], [1], [0, 0, 1, 1], [], []>} : vector<128x64xbf16>, vector<64x64xbf16>, vector<128x64xf32> -> vector<128x64xf32>
    %51 = vector.shape_cast %50 : vector<128x64xf32> to vector<2x8x8x64xf32>
    %cst_42 = arith.constant 0.000000e+00 : f32
    %cst_43 = arith.constant -1.000000e+30 : f32
    %52 = vector.broadcast %cst_42 : f32 to vector<2x8xf32>
    %53 = vector.broadcast %cst_43 : f32 to vector<2x8xf32>
    %54 = arith.select %21, %52, %53 : vector<2x8xi1>, vector<2x8xf32>
    %55 = vector.shape_cast %54 : vector<2x8xf32> to vector<2x1x8x1xf32>
    %56 = vector.broadcast %55 : vector<2x1x8x1xf32> to vector<2x8x8x64xf32>
    %57 = arith.addf %51, %56 : vector<2x8x8x64xf32>
    %cst_44 = arith.constant dense<0xFF800000> : vector<2x8x64xf32>
    %58 = vector.multi_reduction <maximumf>, %57, %cst_44 [2] : vector<2x8x8x64xf32> to vector<2x8x64xf32>
    %59 = vector.shape_cast %58 : vector<2x8x64xf32> to vector<2x8x1x64xf32>
    %60 = vector.broadcast %59 : vector<2x8x1x64xf32> to vector<2x8x8x64xf32>
    %61 = arith.subf %57, %60 : vector<2x8x8x64xf32>
    %62 = math.exp %61 : vector<2x8x8x64xf32>
    %cst_45 = arith.constant dense<0.000000e+00> : vector<2x8x64xf32>
    %63 = vector.multi_reduction <add>, %62, %cst_45 [2] : vector<2x8x8x64xf32> to vector<2x8x64xf32>
    %64 = vector.shape_cast %42 : vector<2x8x64xf32> to vector<2x1x8x64xf32>
    %65 = vector.broadcast %64 : vector<2x1x8x64xf32> to vector<2x8x8x64xf32>
    %66 = arith.mulf %62, %65 : vector<2x8x8x64xf32>
    %cst_46 = arith.constant dense<0.000000e+00> : vector<2x8x64xf32>
    %67 = vector.multi_reduction <add>, %66, %cst_46 [2] : vector<2x8x8x64xf32> to vector<2x8x64xf32>
    %68 = tpu.reciprocal %63 {approx = true} : vector<2x8x64xf32> -> vector<2x8x64xf32>
    %69 = arith.mulf %67, %68 : vector<2x8x64xf32>
    %70 = vector.shape_cast %69 : vector<2x8x64xf32> to vector<16x64xf32>
    %cst_47 = arith.constant dense<0.000000e+00> : vector<16x64xf32>
    %71 = tpu.matmul %70, %7, %cst_47 {dimension_numbers = #tpu.dot_dimension_numbers<[1], [0], [0], [1], [0, 0, 1, 1], [], []>} : vector<16x64xf32>, vector<64x64xf32>, vector<16x64xf32> -> vector<16x64xf32>
    %72 = vector.broadcast %8 : vector<1x64xf32> to vector<16x64xf32>
    %73 = arith.addf %71, %72 : vector<16x64xf32>
    %74 = arith.addf %29, %73 : vector<16x64xf32>
    %cst_48 = arith.constant dense<0.000000e+00> : vector<16xf32>
    %75 = vector.multi_reduction <add>, %74, %cst_48 [1] : vector<16x64xf32> to vector<16xf32>
    %76 = vector.shape_cast %75 : vector<16xf32> to vector<16x1xf32>
    %cst_49 = arith.constant 6.400000e+01 : f32
    %77 = vector.broadcast %cst_49 : f32 to vector<16x1xf32>
    %78 = arith.divf %76, %77 : vector<16x1xf32>
    %79 = vector.broadcast %78 : vector<16x1xf32> to vector<16x64xf32>
    %80 = arith.subf %74, %79 : vector<16x64xf32>
    %81 = arith.mulf %80, %80 : vector<16x64xf32>
    %cst_50 = arith.constant dense<0.000000e+00> : vector<16xf32>
    %82 = vector.multi_reduction <add>, %81, %cst_50 [1] : vector<16x64xf32> to vector<16xf32>
    %83 = vector.shape_cast %82 : vector<16xf32> to vector<16x1xf32>
    %cst_51 = arith.constant 6.400000e+01 : f32
    %84 = vector.broadcast %cst_51 : f32 to vector<16x1xf32>
    %85 = arith.divf %83, %84 : vector<16x1xf32>
    %cst_52 = arith.constant 9.99999974E-6 : f32
    %86 = vector.broadcast %cst_52 : f32 to vector<16x1xf32>
    %87 = arith.addf %85, %86 : vector<16x1xf32>
    %88 = math.rsqrt %87 : vector<16x1xf32>
    %89 = vector.broadcast %88 : vector<16x1xf32> to vector<16x64xf32>
    %90 = arith.mulf %80, %89 : vector<16x64xf32>
    %91 = vector.broadcast %9 : vector<1x64xf32> to vector<16x64xf32>
    %92 = arith.mulf %90, %91 : vector<16x64xf32>
    %93 = vector.broadcast %10 : vector<1x64xf32> to vector<16x64xf32>
    %94 = arith.addf %92, %93 : vector<16x64xf32>
    %95 = vector.shape_cast %94 : vector<16x64xf32> to vector<2x8x64xf32>
    %96 = vector.shape_cast %11 : vector<1x64xf32> to vector<1x1x64xf32>
    %97 = vector.broadcast %96 : vector<1x1x64xf32> to vector<2x8x64xf32>
    %98 = arith.mulf %95, %97 : vector<2x8x64xf32>
    %cst_53 = arith.constant dense<0.000000e+00> : vector<2x8xf32>
    %99 = vector.multi_reduction <add>, %98, %cst_53 [2] : vector<2x8x64xf32> to vector<2x8xf32>
    %cst_54 = arith.constant -1.000000e+09 : f32
    %100 = vector.broadcast %cst_54 : f32 to vector<2x8xf32>
    %101 = arith.select %21, %99, %100 : vector<2x8xi1>, vector<2x8xf32>
    %cst_55 = arith.constant dense<0xFF800000> : vector<2xf32>
    %102 = vector.multi_reduction <maximumf>, %101, %cst_55 [1] : vector<2x8xf32> to vector<2xf32>
    %103 = vector.shape_cast %102 : vector<2xf32> to vector<2x1xf32>
    %104 = vector.broadcast %103 : vector<2x1xf32> to vector<2x8xf32>
    %105 = arith.subf %101, %104 : vector<2x8xf32>
    %106 = math.exp %105 : vector<2x8xf32>
    %107 = vector.shape_cast %106 : vector<2x8xf32> to vector<2x8x1xf32>
    %108 = vector.broadcast %107 : vector<2x8x1xf32> to vector<2x8x64xf32>
    %109 = arith.mulf %95, %108 : vector<2x8x64xf32>
    %cst_56 = arith.constant dense<0.000000e+00> : vector<2x64xf32>
    %110 = vector.multi_reduction <add>, %109, %cst_56 [1] : vector<2x8x64xf32> to vector<2x64xf32>
    %cst_57 = arith.constant dense<0.000000e+00> : vector<2xf32>
    %111 = vector.multi_reduction <add>, %106, %cst_57 [1] : vector<2x8xf32> to vector<2xf32>
    %112 = vector.shape_cast %111 : vector<2xf32> to vector<2x1xf32>
    %113 = tpu.reciprocal %112 {approx = true} : vector<2x1xf32> -> vector<2x1xf32>
    %114 = vector.broadcast %113 : vector<2x1xf32> to vector<2x64xf32>
    %115 = arith.mulf %110, %114 : vector<2x64xf32>
    %cst_58 = arith.constant dense<0.000000e+00> : vector<2x64xf32>
    %116 = tpu.matmul %115, %12, %cst_58 {dimension_numbers = #tpu.dot_dimension_numbers<[1], [0], [0], [1], [0, 0, 1, 1], [], []>} : vector<2x64xf32>, vector<64x64xf32>, vector<2x64xf32> -> vector<2x64xf32>
    %117 = vector.broadcast %13 : vector<1x64xf32> to vector<2x64xf32>
    %118 = arith.addf %116, %117 : vector<2x64xf32>
    %cst_59 = arith.constant 5.000000e-01 : f32
    %119 = vector.broadcast %cst_59 : f32 to vector<2x64xf32>
    %120 = arith.mulf %119, %118 : vector<2x64xf32>
    %cst_60 = arith.constant 0.707106769 : f32
    %121 = vector.broadcast %cst_60 : f32 to vector<2x64xf32>
    %122 = arith.mulf %118, %121 : vector<2x64xf32>
    %123 = math.erf %122 : vector<2x64xf32>
    %cst_61 = arith.constant 1.000000e+00 : f32
    %124 = vector.broadcast %cst_61 : f32 to vector<2x64xf32>
    %125 = arith.addf %124, %123 : vector<2x64xf32>
    %126 = arith.mulf %120, %125 : vector<2x64xf32>
    %cst_62 = arith.constant dense<0.000000e+00> : vector<2x32xf32>
    %127 = tpu.matmul %126, %14, %cst_62 {dimension_numbers = #tpu.dot_dimension_numbers<[1], [0], [0], [1], [0, 0, 1, 1], [], []>} : vector<2x64xf32>, vector<64x32xf32>, vector<2x32xf32> -> vector<2x32xf32>
    %128 = vector.broadcast %15 : vector<1x32xf32> to vector<2x32xf32>
    %129 = arith.addf %127, %128 : vector<2x32xf32>
    %130 = arith.mulf %129, %129 : vector<2x32xf32>
    %cst_63 = arith.constant dense<0.000000e+00> : vector<2xf32>
    %131 = vector.multi_reduction <add>, %130, %cst_63 [1] : vector<2x32xf32> to vector<2xf32>
    %132 = vector.shape_cast %131 : vector<2xf32> to vector<2x1xf32>
    %cst_64 = arith.constant 1.000000e-24 : f32
    %133 = vector.broadcast %cst_64 : f32 to vector<2x1xf32>
    %134 = arith.maximumf %132, %133 : vector<2x1xf32>
    %135 = math.rsqrt %134 : vector<2x1xf32>
    %136 = vector.broadcast %135 : vector<2x1xf32> to vector<2x32xf32>
    %137 = arith.mulf %129, %136 : vector<2x32xf32>
    %c0_65 = arith.constant 0 : index
    %c0_66 = arith.constant 0 : index
    %138 = vector.load %arg19[%c0_65, %c0_66] : memref<2x32xf32, #tpu.memory_space<vmem>>, vector<2x32xf32>
    tpu.vector_store %arg19[%c0_65, %c0_66], %137 {strides = array<i32>} : memref<2x32xf32, #tpu.memory_space<vmem>>, vector<2x32xf32>,
    return
  }
  func.func @transform_0(%arg0: i32) -> (i32, i32, i32) {
    %c0_i32 = arith.constant 0 : i32
    %c0_i32_0 = arith.constant 0 : i32
    %c0_i32_1 = arith.constant 0 : i32
    return %arg0, %c0_i32, %c0_i32_0 : i32, i32, i32
  }
  func.func @transform_1(%arg0: i32) -> (i32, i32) {
    %c0_i32 = arith.constant 0 : i32
    %c0_i32_0 = arith.constant 0 : i32
    return %arg0, %c0_i32 : i32, i32
  }
  func.func @transform_2(%arg0: i32) -> (i32, i32) {
    %c0_i32 = arith.constant 0 : i32
    %c0_i32_0 = arith.constant 0 : i32
    %c0_i32_1 = arith.constant 0 : i32
    return %c0_i32, %c0_i32_0 : i32, i32
  }
  func.func @transform_3(%arg0: i32) -> (i32, i32) {
    %c0_i32 = arith.constant 0 : i32
    %c0_i32_0 = arith.constant 0 : i32
    %c0_i32_1 = arith.constant 0 : i32
    return %c0_i32, %c0_i32_0 : i32, i32
  }
  func.func @transform_4(%arg0: i32) -> (i32, i32) {
    %c0_i32 = arith.constant 0 : i32
    %c0_i32_0 = arith.constant 0 : i32
    %c0_i32_1 = arith.constant 0 : i32
    return %c0_i32, %c0_i32_0 : i32, i32
  }
  func.func @transform_5(%arg0: i32) -> (i32, i32) {
    %c0_i32 = arith.constant 0 : i32
    %c0_i32_0 = arith.constant 0 : i32
    %c0_i32_1 = arith.constant 0 : i32
    return %c0_i32, %c0_i32_0 : i32, i32
  }
  func.func @transform_6(%arg0: i32) -> (i32, i32) {
    %c0_i32 = arith.constant 0 : i32
    %c0_i32_0 = arith.constant 0 : i32
    %c0_i32_1 = arith.constant 0 : i32
    return %c0_i32, %c0_i32_0 : i32, i32
  }
  func.func @transform_7(%arg0: i32) -> (i32, i32) {
    %c0_i32 = arith.constant 0 : i32
    %c0_i32_0 = arith.constant 0 : i32
    %c0_i32_1 = arith.constant 0 : i32
    return %c0_i32, %c0_i32_0 : i32, i32
  }
  func.func @transform_8(%arg0: i32) -> (i32, i32) {
    %c0_i32 = arith.constant 0 : i32
    %c0_i32_0 = arith.constant 0 : i32
    %c0_i32_1 = arith.constant 0 : i32
    return %c0_i32, %c0_i32_0 : i32, i32
  }
  func.func @transform_9(%arg0: i32) -> (i32, i32) {
    %c0_i32 = arith.constant 0 : i32
    %c0_i32_0 = arith.constant 0 : i32
    %c0_i32_1 = arith.constant 0 : i32
    return %c0_i32, %c0_i32_0 : i32, i32
  }
  func.func @transform_10(%arg0: i32) -> (i32, i32) {
    %c0_i32 = arith.constant 0 : i32
    %c0_i32_0 = arith.constant 0 : i32
    %c0_i32_1 = arith.constant 0 : i32
    return %c0_i32, %c0_i32_0 : i32, i32
  }
  func.func @transform_11(%arg0: i32) -> (i32, i32) {
    %c0_i32 = arith.constant 0 : i32
    %c0_i32_0 = arith.constant 0 : i32
    %c0_i32_1 = arith.constant 0 : i32
    return %c0_i32, %c0_i32_0 : i32, i32
  }
  func.func @transform_12(%arg0: i32) -> (i32, i32) {
    %c0_i32 = arith.constant 0 : i32
    %c0_i32_0 = arith.constant 0 : i32
    %c0_i32_1 = arith.constant 0 : i32
    return %c0_i32, %c0_i32_0 : i32, i32
  }
  func.func @transform_13(%arg0: i32) -> (i32, i32) {
    %c0_i32 = arith.constant 0 : i32
    %c0_i32_0 = arith.constant 0 : i32
    %c0_i32_1 = arith.constant 0 : i32
    return %c0_i32, %c0_i32_0 : i32, i32
  }
  func.func @transform_14(%arg0: i32) -> (i32, i32) {
    %c0_i32 = arith.constant 0 : i32
    %c0_i32_0 = arith.constant 0 : i32
    %c0_i32_1 = arith.constant 0 : i32
    return %c0_i32, %c0_i32_0 : i32, i32
  }
  func.func @transform_15(%arg0: i32) -> (i32, i32) {
    %c0_i32 = arith.constant 0 : i32
    %c0_i32_0 = arith.constant 0 : i32
    %c0_i32_1 = arith.constant 0 : i32
    return %c0_i32, %c0_i32_0 : i32, i32
  }
  func.func @transform_16(%arg0: i32) -> (i32, i32) {
    %c0_i32 = arith.constant 0 : i32
    %c0_i32_0 = arith.constant 0 : i32
    %c0_i32_1 = arith.constant 0 : i32
    return %c0_i32, %c0_i32_0 : i32, i32
  }
  func.func @transform_17(%arg0: i32) -> (i32, i32) {
    %c0_i32 = arith.constant 0 : i32
    %c0_i32_0 = arith.constant 0 : i32
    %c0_i32_1 = arith.constant 0 : i32
    return %c0_i32, %c0_i32_0 : i32, i32
  }
  func.func @transform_18(%arg0: i32) -> (i32, i32) {
    %c0_i32 = arith.constant 0 : i32
    %c0_i32_0 = arith.constant 0 : i32
    return %arg0, %c0_i32 : i32, i32
  }
}

</mosaic_0001>

<llo_original>
// kernel: tpu_custom_call.1
$region0: #{tpu_custom_call.1}
  #allocation0 [shape = 'u32[]', space=smem, size = 0x4, offset = 0x4, fixed_abs, tag = 'smem constant byte address 0x4 - core index']
  #allocation1 [shape = 'u32[72,128]{1,0:T(1,128)}', space=vmem, size = 0x9000, scoped, tag = 'internal scratch']
  %s0 = inlined_call_operand.vmem [shape: bf16[2,8,64], index: 0, kind: input, shape index: {}]
  %s1 = inlined_call_operand.hbm [shape: f32[2,8], index: 1, kind: input, shape index: {}]
  %s2 = inlined_call_operand.vmem [shape: bf16[64,64], index: 2, kind: input, shape index: {}]
  %s3 = inlined_call_operand.hbm [shape: bf16[64,64], index: 3, kind: input, shape index: {}]
  %s4 = inlined_call_operand.hbm [shape: bf16[64,64], index: 4, kind: input, shape index: {}]
  %s5 = inlined_call_operand.hbm [shape: bf16[64,64], index: 5, kind: input, shape index: {}]
  %s6 = inlined_call_operand.hbm [shape: f32[1,64], index: 6, kind: input, shape index: {}]
  %s7 = inlined_call_operand.hbm [shape: f32[1,64], index: 7, kind: input, shape index: {}]
  %s8 = inlined_call_operand.hbm [shape: f32[1,64], index: 8, kind: input, shape index: {}]
  %s9 = inlined_call_operand.vmem [shape: f32[64,64], index: 9, kind: input, shape index: {}]
  %s10 = inlined_call_operand.vmem [shape: f32[1,64], index: 10, kind: input, shape index: {}]
  %s11 = inlined_call_operand.hbm [shape: f32[1,64], index: 11, kind: input, shape index: {}]
  %s12 = inlined_call_operand.vmem [shape: f32[1,64], index: 12, kind: input, shape index: {}]
  %s13 = inlined_call_operand.vmem [shape: f32[1,64], index: 13, kind: input, shape index: {}]
  %s14 = inlined_call_operand.hbm [shape: f32[64,64], index: 14, kind: input, shape index: {}]
  %s15 = inlined_call_operand.vmem [shape: f32[1,64], index: 15, kind: input, shape index: {}]
  %s16 = inlined_call_operand.vmem [shape: f32[64,32], index: 16, kind: input, shape index: {}]
  %s17 = inlined_call_operand.vmem [shape: f32[1,32], index: 17, kind: input, shape index: {}]
  %s18 = inlined_call_operand.hbm [shape: f32[2,32], index: 18, kind: output, shape index: {}]
  %s19 = sld [smem:[#allocation0]]
  $region118: #{tpu_custom_call.1} parent=0
    _
  %s21 = ssub.s32 1, %s19
  %s22 = scalar_select 0, %s21, %s19
  $region1: #{tpu_custom_call.1} parent=0
    #allocation2 [shape = 'u8[1024]{0}', space=vmem, size = 0x400, scoped, tag = 'input window, operand 1, single buffered']
    #allocation3 [shape = 's32[1]{0}', space=sflag, size = 0x4, scoped, tag = 'scoped memory for tpu_custom_call.1']
    #allocation4 [shape = 's32[1]{0}', space=sflag, size = 0x4, scoped, tag = 'scoped memory for tpu_custom_call.1']
    #allocation5 [shape = 'u8[16384]{0}', space=vmem, size = 0x4000, scoped, tag = 'input window, operand 3, single buffered']
    #allocation6 [shape = 's32[1]{0}', space=sflag, size = 0x4, scoped, tag = 'scoped memory for tpu_custom_call.1']
    #allocation7 [shape = 'u8[16384]{0}', space=vmem, size = 0x4000, scoped, tag = 'input window, operand 4, single buffered']
    #allocation8 [shape = 'u8[16384]{0}', space=vmem, size = 0x4000, scoped, tag = 'input window, operand 5, single buffered']
    #allocation9 [shape = 's32[1]{0}', space=sflag, size = 0x4, scoped, tag = 'scoped memory for tpu_custom_call.1']
    #allocation10 [shape = 'u8[512]{0}', space=vmem, size = 0x400, scoped, tag = 'input window, operand 6, single buffered']
    #allocation11 [shape = 'u8[512]{0}', space=vmem, size = 0x400, scoped, tag = 'input window, operand 7, single buffered']
    #allocation12 [shape = 's32[1]{0}', space=sflag, size = 0x4, scoped, tag = 'scoped memory for tpu_custom_call.1']
    #allocation13 [shape = 'u8[512]{0}', space=vmem, size = 0x400, scoped, tag = 'input window, operand 8, single buffered']
    #allocation14 [shape = 'u8[512]{0}', space=vmem, size = 0x400, scoped, tag = 'input window, operand 11, single buffered']
    #allocation15 [shape = 's32[1]{0}', space=sflag, size = 0x4, scoped, tag = 'scoped memory for tpu_custom_call.1']
    #allocation16 [shape = 'u8[32768]{0}', space=vmem, size = 0x8000, scoped, tag = 'input window, operand 14, single buffered']
    #allocation17 [shape = 'u8[1024]{0}', space=vmem, size = 0x400, scoped, tag = 'output window, operand 0, single buffered']
    %23 = vsyncpa [#allocation3], 0
    %24 = vsyncpa [#allocation6], 0
    %25 = vsyncpa [#allocation9], 0
    %26 = vsyncpa [#allocation12], 0
    %27 = vsyncpa [#allocation15], 0
    %28 = vsyncpa [#allocation4], 0
    // Predicated region
    $region2: #{tpu_custom_call.1} parent=1 // pred_check
      _
    $region3: #{tpu_custom_call.1} parent=1 // pred_check_branch
      %30 = sbr.rel (0) target = $region5
    $region4: #{tpu_custom_call.1} parent=1 // pred_region
      _
    $region5: #{tpu_custom_call.1} parent=1 // pred_fallthru
      _
    // Predicated region
    $region6: #{tpu_custom_call.1} parent=1 // pred_check
      _
    $region7: #{tpu_custom_call.1} parent=1 // pred_check_branch
      %32 = sbr.rel (0) target = $region9
    $region8: #{tpu_custom_call.1} parent=1 // pred_region
      %34 = vsyncadd [#allocation3], 0
      %s36 = sshll.u32 %s1, 4
      %s37 = int_to_ptr.hbm [resolvable:$true] %s36
      %s38 = sshll.u32 [#allocation2], 4
      %s39 = int_to_ptr.vmem [resolvable:$true] %s38
      %41 = dma.hbm_to_vmem [thread:$0]  %s37, 32, %s39, [#allocation3]
    $region9: #{tpu_custom_call.1} parent=1 // pred_fallthru
      _
    // Predicated region
    $region10: #{tpu_custom_call.1} parent=1 // pred_check
      _
    $region11: #{tpu_custom_call.1} parent=1 // pred_check_branch
      %43 = sbr.rel (0) target = $region13
    $region12: #{tpu_custom_call.1} parent=1 // pred_region
      _
    $region13: #{tpu_custom_call.1} parent=1 // pred_fallthru
      _
    // Predicated region
    $region14: #{tpu_custom_call.1} parent=1 // pred_check
      _
    $region15: #{tpu_custom_call.1} parent=1 // pred_check_branch
      %45 = sbr.rel (0) target = $region17
    $region16: #{tpu_custom_call.1} parent=1 // pred_region
      %47 = vsyncadd [#allocation6], 0
      %s48 = sshll.u32 %s3, 4
      %s49 = int_to_ptr.hbm [resolvable:$true] %s48
      %s50 = sshll.u32 [#allocation5], 4
      %s51 = int_to_ptr.vmem [resolvable:$true] %s50
      %56 = dma.hbm_to_vmem [thread:$0]  %s49, 512, %s51, [#allocation6], 64, 64, 4
    $region17: #{tpu_custom_call.1} parent=1 // pred_fallthru
      _
    // Predicated region
    $region18: #{tpu_custom_call.1} parent=1 // pred_check
      _
    $region19: #{tpu_custom_call.1} parent=1 // pred_check_branch
      %58 = sbr.rel (0) target = $region21
    $region20: #{tpu_custom_call.1} parent=1 // pred_region
      %60 = vsyncadd [#allocation6], 0
      %s61 = sshll.u32 %s4, 4
      %s62 = int_to_ptr.hbm [resolvable:$true] %s61
      %s63 = sshll.u32 [#allocation7], 4
      %s64 = int_to_ptr.vmem [resolvable:$true] %s63
      %69 = dma.hbm_to_vmem [thread:$0]  %s62, 512, %s64, [#allocation6], 64, 64, 4
    $region21: #{tpu_custom_call.1} parent=1 // pred_fallthru
      _
    // Predicated region
    $region22: #{tpu_custom_call.1} parent=1 // pred_check
      _
    $region23: #{tpu_custom_call.1} parent=1 // pred_check_branch
      %71 = sbr.rel (0) target = $region25
    $region24: #{tpu_custom_call.1} parent=1 // pred_region
      %73 = vsyncadd [#allocation9], 0
      %s74 = sshll.u32 %s5, 4
      %s75 = int_to_ptr.hbm [resolvable:$true] %s74
      %s76 = sshll.u32 [#allocation8], 4
      %s77 = int_to_ptr.vmem [resolvable:$true] %s76
      %82 = dma.hbm_to_vmem [thread:$0]  %s75, 512, %s77, [#allocation9], 64, 64, 4
    $region25: #{tpu_custom_call.1} parent=1 // pred_fallthru
      _
    // Predicated region
    $region26: #{tpu_custom_call.1} parent=1 // pred_check
      _
    $region27: #{tpu_custom_call.1} parent=1 // pred_check_branch
      %84 = sbr.rel (0) target = $region29
    $region28: #{tpu_custom_call.1} parent=1 // pred_region
      %86 = vsyncadd [#allocation9], 0
      %s88 = sshll.u32 %s6, 4
      %s89 = int_to_ptr.hbm [resolvable:$true] %s88
      %s90 = sshll.u32 [#allocation10], 4
      %s91 = int_to_ptr.vmem [resolvable:$true] %s90
      %93 = dma.hbm_to_vmem [thread:$0]  %s89, 16, %s91, [#allocation9]
    $region29: #{tpu_custom_call.1} parent=1 // pred_fallthru
      _
    // Predicated region
    $region30: #{tpu_custom_call.1} parent=1 // pred_check
      _
    $region31: #{tpu_custom_call.1} parent=1 // pred_check_branch
      %95 = sbr.rel (0) target = $region33
    $region32: #{tpu_custom_call.1} parent=1 // pred_region
      %97 = vsyncadd [#allocation12], 0
      %s99 = sshll.u32 %s7, 4
      %s100 = int_to_ptr.hbm [resolvable:$true] %s99
      %s101 = sshll.u32 [#allocation11], 4
      %s102 = int_to_ptr.vmem [resolvable:$true] %s101
      %104 = dma.hbm_to_vmem [thread:$0]  %s100, 16, %s102, [#allocation12]
    $region33: #{tpu_custom_call.1} parent=1 // pred_fallthru
      _
    // Predicated region
    $region34: #{tpu_custom_call.1} parent=1 // pred_check
      _
    $region35: #{tpu_custom_call.1} parent=1 // pred_check_branch
      %106 = sbr.rel (0) target = $region37
    $region36: #{tpu_custom_call.1} parent=1 // pred_region
      %108 = vsyncadd [#allocation12], 0
      %s110 = sshll.u32 %s8, 4
      %s111 = int_to_ptr.hbm [resolvable:$true] %s110
      %s112 = sshll.u32 [#allocation13], 4
      %s113 = int_to_ptr.vmem [resolvable:$true] %s112
      %115 = dma.hbm_to_vmem [thread:$0]  %s111, 16, %s113, [#allocation12]
    $region37: #{tpu_custom_call.1} parent=1 // pred_fallthru
      _
    // Predicated region
    $region38: #{tpu_custom_call.1} parent=1 // pred_check
      _
    $region39: #{tpu_custom_call.1} parent=1 // pred_check_branch
      %117 = sbr.rel (0) target = $region41
    $region40: #{tpu_custom_call.1} parent=1 // pred_region
      _
    $region41: #{tpu_custom_call.1} parent=1 // pred_fallthru
      _
    // Predicated region
    $region42: #{tpu_custom_call.1} parent=1 // pred_check
      _
    $region43: #{tpu_custom_call.1} parent=1 // pred_check_branch
      %119 = sbr.rel (0) target = $region45
    $region44: #{tpu_custom_call.1} parent=1 // pred_region
      _
    $region45: #{tpu_custom_call.1} parent=1 // pred_fallthru
      _
    // Predicated region
    $region46: #{tpu_custom_call.1} parent=1 // pred_check
      _
    $region47: #{tpu_custom_call.1} parent=1 // pred_check_branch
      %121 = sbr.rel (0) target = $region49
    $region48: #{tpu_custom_call.1} parent=1 // pred_region
      %123 = vsyncadd [#allocation15], 0
      %s125 = sshll.u32 %s11, 4
      %s126 = int_to_ptr.hbm [resolvable:$true] %s125
      %s127 = sshll.u32 [#allocation14], 4
      %s128 = int_to_ptr.vmem [resolvable:$true] %s127
      %130 = dma.hbm_to_vmem [thread:$0]  %s126, 16, %s128, [#allocation15]
    $region49: #{tpu_custom_call.1} parent=1 // pred_fallthru
      _
    // Predicated region
    $region50: #{tpu_custom_call.1} parent=1 // pred_check
      _
    $region51: #{tpu_custom_call.1} parent=1 // pred_check_branch
      %132 = sbr.rel (0) target = $region53
    $region52: #{tpu_custom_call.1} parent=1 // pred_region
      _
    $region53: #{tpu_custom_call.1} parent=1 // pred_fallthru
      _
    // Predicated region
    $region54: #{tpu_custom_call.1} parent=1 // pred_check
      _
    $region55: #{tpu_custom_call.1} parent=1 // pred_check_branch
      %134 = sbr.rel (0) target = $region57
    $region56: #{tpu_custom_call.1} parent=1 // pred_region
      _
    $region57: #{tpu_custom_call.1} parent=1 // pred_fallthru
      _
    // Predicated region
    $region58: #{tpu_custom_call.1} parent=1 // pred_check
      _
    $region59: #{tpu_custom_call.1} parent=1 // pred_check_branch
      %136 = sbr.rel (0) target = $region61
    $region60: #{tpu_custom_call.1} parent=1 // pred_region
      %138 = vsyncadd [#allocation15], 0
      %s139 = sshll.u32 %s14, 4
      %s140 = int_to_ptr.hbm [resolvable:$true] %s139
      %s141 = sshll.u32 [#allocation16], 4
      %s142 = int_to_ptr.vmem [resolvable:$true] %s141
      %147 = dma.hbm_to_vmem [thread:$0]  %s140, 1024, %s142, [#allocation15], 128, 128, 8
    $region61: #{tpu_custom_call.1} parent=1 // pred_fallthru
      _
    // Predicated region
    $region62: #{tpu_custom_call.1} parent=1 // pred_check
      _
    $region63: #{tpu_custom_call.1} parent=1 // pred_check_branch
      %149 = sbr.rel (0) target = $region65
    $region64: #{tpu_custom_call.1} parent=1 // pred_region
      _
    $region65: #{tpu_custom_call.1} parent=1 // pred_fallthru
      _
    // Predicated region
    $region66: #{tpu_custom_call.1} parent=1 // pred_check
      _
    $region67: #{tpu_custom_call.1} parent=1 // pred_check_branch
      %151 = sbr.rel (0) target = $region69
    $region68: #{tpu_custom_call.1} parent=1 // pred_region
      _
    $region69: #{tpu_custom_call.1} parent=1 // pred_fallthru
      _
    // Predicated region
    $region70: #{tpu_custom_call.1} parent=1 // pred_check
      _
    $region71: #{tpu_custom_call.1} parent=1 // pred_check_branch
      %153 = sbr.rel (0) target = $region73
    $region72: #{tpu_custom_call.1} parent=1 // pred_region
      _
    $region73: #{tpu_custom_call.1} parent=1 // pred_fallthru
      _
    // Predicated region
    $region74: #{tpu_custom_call.1} parent=1 // pred_check
      _
    $region75: #{tpu_custom_call.1} parent=1 // pred_check_branch
      %155 = sbr.rel (0) target = $region77
    $region76: #{tpu_custom_call.1} parent=1 // pred_region
      %157 = dma.done [#allocation3], 32
    $region77: #{tpu_custom_call.1} parent=1 // pred_fallthru
      _
    // Predicated region
    $region78: #{tpu_custom_call.1} parent=1 // pred_check
      _
    $region79: #{tpu_custom_call.1} parent=1 // pred_check_branch
      %159 = sbr.rel (0) target = $region81
    $region80: #{tpu_custom_call.1} parent=1 // pred_region
      %161 = dma.done [#allocation6], 512
    $region81: #{tpu_custom_call.1} parent=1 // pred_fallthru
      _
    // Predicated region
    $region82: #{tpu_custom_call.1} parent=1 // pred_check
      _
    $region83: #{tpu_custom_call.1} parent=1 // pred_check_branch
      %163 = sbr.rel (0) target = $region85
    $region84: #{tpu_custom_call.1} parent=1 // pred_region
      %165 = dma.done [#allocation6], 512
    $region85: #{tpu_custom_call.1} parent=1 // pred_fallthru
      _
    // Predicated region
    $region86: #{tpu_custom_call.1} parent=1 // pred_check
      _
    $region87: #{tpu_custom_call.1} parent=1 // pred_check_branch
      %167 = sbr.rel (0) target = $region89
    $region88: #{tpu_custom_call.1} parent=1 // pred_region
      %169 = dma.done [#allocation9], 512
    $region89: #{tpu_custom_call.1} parent=1 // pred_fallthru
      _
    // Predicated region
    $region90: #{tpu_custom_call.1} parent=1 // pred_check
      _
    $region91: #{tpu_custom_call.1} parent=1 // pred_check_branch
      %171 = sbr.rel (0) target = $region93
    $region92: #{tpu_custom_call.1} parent=1 // pred_region
      %173 = dma.done [#allocation9], 16
    $region93: #{tpu_custom_call.1} parent=1 // pred_fallthru
      _
    // Predicated region
    $region94: #{tpu_custom_call.1} parent=1 // pred_check
      _
    $region95: #{tpu_custom_call.1} parent=1 // pred_check_branch
      %175 = sbr.rel (0) target = $region97
    $region96: #{tpu_custom_call.1} parent=1 // pred_region
      %177 = dma.done [#allocation12], 16
    $region97: #{tpu_custom_call.1} parent=1 // pred_fallthru
      _
    // Predicated region
    $region98: #{tpu_custom_call.1} parent=1 // pred_check
      _
    $region99: #{tpu_custom_call.1} parent=1 // pred_check_branch
      %179 = sbr.rel (0) target = $region101
    $region100: #{tpu_custom_call.1} parent=1 // pred_region
      %181 = dma.done [#allocation12], 16
    $region101: #{tpu_custom_call.1} parent=1 // pred_fallthru
      _
    // Predicated region
    $region102: #{tpu_custom_call.1} parent=1 // pred_check
      _
    $region103: #{tpu_custom_call.1} parent=1 // pred_check_branch
      %183 = sbr.rel (0) target = $region105
    $region104: #{tpu_custom_call.1} parent=1 // pred_region
      %185 = dma.done [#allocation15], 16
    $region105: #{tpu_custom_call.1} parent=1 // pred_fallthru
      _
    // Predicated region
    $region106: #{tpu_custom_call.1} parent=1 // pred_check
      _
    $region107: #{tpu_custom_call.1} parent=1 // pred_check_branch
      %187 = sbr.rel (0) target = $region109
    $region108: #{tpu_custom_call.1} parent=1 // pred_region
      %189 = dma.done [#allocation15], 1024
    $region109: #{tpu_custom_call.1} parent=1 // pred_fallthru
      _
    %v191 = vld [vmem:[%s2] sm:$0xf]
    %v192 = vld [vmem:[%s2 + $0x4] sm:$0xf]
    %v193 = vld [vmem:[%s2 + $0x8] sm:$0xf]
    %v194 = vld [vmem:[%s2 + $0xc] sm:$0xf]
    %v195 = vld [vmem:[%s2 + $0x10] sm:$0xf]
    %v196 = vld [vmem:[%s2 + $0x14] sm:$0xf]
    %v197 = vld [vmem:[%s2 + $0x18] sm:$0xf]
    %v198 = vld [vmem:[%s2 + $0x1c] sm:$0xf]
    %v199 = vld [vmem:[#allocation5] sm:$0xf]
    %v200 = vld [vmem:[#allocation5 + $0x4] sm:$0xf]
    %v201 = vld [vmem:[#allocation5 + $0x8] sm:$0xf]
    %v202 = vld [vmem:[#allocation5 + $0xc] sm:$0xf]
    %v203 = vld [vmem:[#allocation5 + $0x10] sm:$0xf]
    %v204 = vld [vmem:[#allocation5 + $0x14] sm:$0xf]
    %v205 = vld [vmem:[#allocation5 + $0x18] sm:$0xf]
    %v206 = vld [vmem:[#allocation5 + $0x1c] sm:$0xf]
    %v207 = vld [vmem:[#allocation7] sm:$0xf]
    %v208 = vld [vmem:[#allocation7 + $0x4] sm:$0xf]
    %v209 = vld [vmem:[#allocation7 + $0x8] sm:$0xf]
    %v210 = vld [vmem:[#allocation7 + $0xc] sm:$0xf]
    %v211 = vld [vmem:[#allocation7 + $0x10] sm:$0xf]
    %v212 = vld [vmem:[#allocation7 + $0x14] sm:$0xf]
    %v213 = vld [vmem:[#allocation7 + $0x18] sm:$0xf]
    %v214 = vld [vmem:[#allocation7 + $0x1c] sm:$0xf]
    %v215 = vld [vmem:[#allocation8] sm:$0xf]
    %v216 = vld [vmem:[#allocation8 + $0x4] sm:$0xf]
    %v217 = vld [vmem:[#allocation8 + $0x8] sm:$0xf]
    %v218 = vld [vmem:[#allocation8 + $0xc] sm:$0xf]
    %v219 = vld [vmem:[#allocation8 + $0x10] sm:$0xf]
    %v220 = vld [vmem:[#allocation8 + $0x14] sm:$0xf]
    %v221 = vld [vmem:[#allocation8 + $0x18] sm:$0xf]
    %v222 = vld [vmem:[#allocation8 + $0x1c] sm:$0xf]
    %v223 = vld [vmem:[#allocation10] sm:$0x1]
    %v224 = vld [vmem:[#allocation11] sm:$0x1]
    %v225 = vld [vmem:[#allocation13] sm:$0x1]
    %v226 = vld [vmem:[%s9] sm:$0xff]
    %v227 = vld [vmem:[%s9 + $0x8] sm:$0xff]
    %v228 = vld [vmem:[%s9 + $0x10] sm:$0xff]
    %v229 = vld [vmem:[%s9 + $0x18] sm:$0xff]
    %v230 = vld [vmem:[%s9 + $0x20] sm:$0xff]
    %v231 = vld [vmem:[%s9 + $0x28] sm:$0xff]
    %v232 = vld [vmem:[%s9 + $0x30] sm:$0xff]
    %v233 = vld [vmem:[%s9 + $0x38] sm:$0xff]
    %v234 = vld [vmem:[%s10] sm:$0x1]
    %v235 = vld [vmem:[#allocation14] sm:$0x1]
    %v236 = vld [vmem:[%s12] sm:$0x1]
    %v237 = vld [vmem:[%s13] sm:$0x1]
    %v238 = vld [vmem:[#allocation16] sm:$0xff]
    %v239 = vld [vmem:[#allocation16 + $0x8] sm:$0xff]
    %v240 = vld [vmem:[#allocation16 + $0x10] sm:$0xff]
    %v241 = vld [vmem:[#allocation16 + $0x18] sm:$0xff]
    %v242 = vld [vmem:[#allocation16 + $0x20] sm:$0xff]
    %v243 = vld [vmem:[#allocation16 + $0x28] sm:$0xff]
    %v244 = vld [vmem:[#allocation16 + $0x30] sm:$0xff]
    %v245 = vld [vmem:[#allocation16 + $0x38] sm:$0xff]
    %v246 = vld [vmem:[%s15] sm:$0x1]
    %v247 = vld [vmem:[%s16] sm:$0xff]
    %v248 = vld [vmem:[%s16 + $0x8] sm:$0xff]
    %v249 = vld [vmem:[%s16 + $0x10] sm:$0xff]
    %v250 = vld [vmem:[%s16 + $0x18] sm:$0xff]
    %v251 = vld [vmem:[%s16 + $0x20] sm:$0xff]
    %v252 = vld [vmem:[%s16 + $0x28] sm:$0xff]
    %v253 = vld [vmem:[%s16 + $0x30] sm:$0xff]
    %v254 = vld [vmem:[%s16 + $0x38] sm:$0xff]
    %v255 = vld [vmem:[%s17] sm:$0x1]
    %v256 = vld [vmem:[%s0] sm:$0xf]
    %v257 = vld [vmem:[%s0 + $0x4] sm:$0xf]
    %v258 = vunpack.c.l.bf16 %v256
    %v259 = vunpack.c.l.bf16 %v257
    %v260 = vld [vmem:[#allocation2] sm:$0x3]
    %vm261 = vcmp.ne.f32.partialorder %v260, 0.0
    %v262 = vmul.f32 %v258, %v258
    %v263 = vmul.f32 %v259, %v259
    %vm264 = vcmask 523264
    %v265 = vsel %vm264, %v262, 0.0
    %266 = vadd.xlane.f32.xlu0 %v265
    %v267 = vpop.xlane.xlu0 %266
    %v268 = vsel %vm264, %v263, 0.0
    %269 = vadd.xlane.f32.xlu0 %v268
    %v270 = vpop.xlane.xlu0 %269
    %v271 = vmax.f32 %v267, 1e-24
    %v272 = vmax.f32 %v270, 1e-24
    %v273 = vrsqrt.pop %v271
    %v274 = vmul.f32 %v273, %v271
    %v275 = vmul.f32 %v274, %v273
    %v276 = vmul.f32 0.5, %v275
    %v277 = vsub.f32 1.5, %v276
    %v278 = vmul.f32 %v273, %v277
    %vm279 = vweird.f32 %v271
    %vm280 = vweird.f32 %v273
    %vm281 = vmor %vm279, %vm280
    %v282 = vsel %vm281, %v273, %v278
    %v283 = vrsqrt.pop %v272
    %v284 = vmul.f32 %v283, %v272
    %v285 = vmul.f32 %v284, %v283
    %v286 = vmul.f32 0.5, %v285
    %v287 = vsub.f32 1.5, %v286
    %v288 = vmul.f32 %v283, %v287
    %vm289 = vweird.f32 %v272
    %vm290 = vweird.f32 %v283
    %vm291 = vmor %vm289, %vm290
    %v292 = vsel %vm291, %v283, %v288
    %v293 = vmul.f32 %v258, %v282
    %v294 = vmul.f32 %v259, %v292
    %v295 = vpack.c.bf16 %v294, %v293
    %v297 = vperm.slane %v223, 0
    %v307 = vunpack.c.l.b16 %v199
    %v308 = vunpack.c.l.b16 %v200
    %v309 = vunpack.c.l.b16 %v201
    %v310 = vunpack.c.l.b16 %v202
    %v311 = vunpack.c.l.b16 %v203
    %v312 = vunpack.c.l.b16 %v204
    %v313 = vunpack.c.l.b16 %v205
    %v314 = vunpack.c.l.b16 %v206
    %v315 = vpack.c.b16 %v308, %v307
    %v316 = vpack.c.b16 %v310, %v309
    %v317 = vpack.c.b16 %v312, %v311
    %v318 = vpack.c.b16 %v314, %v313
    %v324 = vsel %vm264, %v295, 0
    %326 = vmatpush.bf16.msra.mxu0 0
    %327 = vmatpush.bf16.msra.mxu0 0
    %328 = vmatpush.bf16.msra.mxu0 0
    %329 = vmatpush.bf16.msra.mxu0 0
    %330 = vmatpush.bf16.msra.mxu0 %v318
    %331 = vmatpush.bf16.msra.mxu0 %v317
    %332 = vmatpush.bf16.msra.mxu0 %v316
    %333 = vmatpush.bf16.msra.mxu0 %v315
    %334 = vmatmul.bf16.gmra.mxu0 %v324
    %v335 = vpop.f32.mrf.mxu0
    %v336 = vadd.f32 %v297, %v335
    %v337 = vpop.f32.mrf.mxu0
    %v338 = vadd.f32 %v297, %v337
    %339 = vdwg.mxu0
    %v341 = vperm.slane %v224, 0
    %v351 = vunpack.c.l.b16 %v207
    %v352 = vunpack.c.l.b16 %v208
    %v353 = vunpack.c.l.b16 %v209
    %v354 = vunpack.c.l.b16 %v210
    %v355 = vunpack.c.l.b16 %v211
    %v356 = vunpack.c.l.b16 %v212
    %v357 = vunpack.c.l.b16 %v213
    %v358 = vunpack.c.l.b16 %v214
    %v359 = vpack.c.b16 %v352, %v351
    %v360 = vpack.c.b16 %v354, %v353
    %v361 = vpack.c.b16 %v356, %v355
    %v362 = vpack.c.b16 %v358, %v357
    %367 = vmatpush.bf16.msra.mxu0 0
    %368 = vmatpush.bf16.msra.mxu0 0
    %369 = vmatpush.bf16.msra.mxu0 0
    %370 = vmatpush.bf16.msra.mxu0 0
    %371 = vmatpush.bf16.msra.mxu0 %v362
    %372 = vmatpush.bf16.msra.mxu0 %v361
    %373 = vmatpush.bf16.msra.mxu0 %v360
    %374 = vmatpush.bf16.msra.mxu0 %v359
    %375 = vmatmul.bf16.gmra.mxu0 %v324
    %v376 = vpop.f32.mrf.mxu0
    %v377 = vadd.f32 %v341, %v376
    %v378 = vpop.f32.mrf.mxu0
    %v379 = vadd.f32 %v341, %v378
    %380 = vdwg.mxu0
    %v382 = vperm.slane %v225, 0
    %v392 = vunpack.c.l.b16 %v215
    %v393 = vunpack.c.l.b16 %v216
    %v394 = vunpack.c.l.b16 %v217
    %v395 = vunpack.c.l.b16 %v218
    %v396 = vunpack.c.l.b16 %v219
    %v397 = vunpack.c.l.b16 %v220
    %v398 = vunpack.c.l.b16 %v221
    %v399 = vunpack.c.l.b16 %v222
    %v400 = vpack.c.b16 %v393, %v392
    %v401 = vpack.c.b16 %v395, %v394
    %v402 = vpack.c.b16 %v397, %v396
    %v403 = vpack.c.b16 %v399, %v398
    %408 = vmatpush.bf16.msra.mxu0 0
    %409 = vmatpush.bf16.msra.mxu0 0
    %410 = vmatpush.bf16.msra.mxu0 0
    %411 = vmatpush.bf16.msra.mxu0 0
    %412 = vmatpush.bf16.msra.mxu0 %v403
    %413 = vmatpush.bf16.msra.mxu0 %v402
    %414 = vmatpush.bf16.msra.mxu0 %v401
    %415 = vmatpush.bf16.msra.mxu0 %v400
    %416 = vmatmul.bf16.gmra.mxu0 %v324
    %v417 = vpop.f32.mrf.mxu0
    %v418 = vadd.f32 %v382, %v417
    %v419 = vpop.f32.mrf.mxu0
    %v420 = vadd.f32 %v382, %v419
    %421 = vdwg.mxu0
    %v424 = vrot.slane %v336, 1
    %v425 = vrot.slane %v336, 2
    %v426 = vrot.slane %v336, 3
    %v427 = vrot.slane %v336, 4
    %v428 = vrot.slane %v336, 5
    %v429 = vrot.slane %v336, 6
    %v430 = vrot.slane %v336, 7
    %v431 = vrot.slane %v338, 1
    %v432 = vrot.slane %v338, 2
    %v433 = vrot.slane %v338, 3
    %v434 = vrot.slane %v338, 4
    %v435 = vrot.slane %v338, 5
    %v436 = vrot.slane %v338, 6
    %v437 = vrot.slane %v338, 7
    %v438 = vperm.slane %v336, 0
    %v439 = vperm.slane %v424, 0
    %v440 = vperm.slane %v425, 0
    %v441 = vperm.slane %v426, 0
    %v442 = vperm.slane %v427, 0
    %v443 = vperm.slane %v428, 0
    %v444 = vperm.slane %v429, 0
    %v445 = vperm.slane %v430, 0
    %v446 = vperm.slane %v338, 0
    %v447 = vperm.slane %v431, 0
    %v448 = vperm.slane %v432, 0
    %v449 = vperm.slane %v433, 0
    %v450 = vperm.slane %v434, 0
    %v451 = vperm.slane %v435, 0
    %v452 = vperm.slane %v436, 0
    %v453 = vperm.slane %v437, 0
    %v470 = vmul.f32 %v438, %v377
    %v471 = vmul.f32 %v439, %v377
    %v472 = vmul.f32 %v440, %v377
    %v473 = vmul.f32 %v441, %v377
    %v474 = vmul.f32 %v442, %v377
    %v475 = vmul.f32 %v443, %v377
    %v476 = vmul.f32 %v444, %v377
    %v477 = vmul.f32 %v445, %v377
    %v478 = vmul.f32 %v446, %v379
    %v479 = vmul.f32 %v447, %v379
    %v480 = vmul.f32 %v448, %v379
    %v481 = vmul.f32 %v449, %v379
    %v482 = vmul.f32 %v450, %v379
    %v483 = vmul.f32 %v451, %v379
    %v484 = vmul.f32 %v452, %v379
    %v485 = vmul.f32 %v453, %v379
    %v486 = vpack.c.bf16 %v471, %v470
    %v487 = vpack.c.bf16 %v473, %v472
    %v488 = vpack.c.bf16 %v475, %v474
    %v489 = vpack.c.bf16 %v477, %v476
    %v490 = vpack.c.bf16 %v479, %v478
    %v491 = vpack.c.bf16 %v481, %v480
    %v492 = vpack.c.bf16 %v483, %v482
    %v493 = vpack.c.bf16 %v485, %v484
    %v502 = vunpack.c.l.b16 %v191
    %v503 = vunpack.c.l.b16 %v192
    %v504 = vunpack.c.l.b16 %v193
    %v505 = vunpack.c.l.b16 %v194
    %v506 = vunpack.c.l.b16 %v195
    %v507 = vunpack.c.l.b16 %v196
    %v508 = vunpack.c.l.b16 %v197
    %v509 = vunpack.c.l.b16 %v198
    %v510 = vpack.c.b16 %v503, %v502
    %v511 = vpack.c.b16 %v505, %v504
    %v512 = vpack.c.b16 %v507, %v506
    %v513 = vpack.c.b16 %v509, %v508
    %v519 = vsel %vm264, %v486, 0
    %v522 = vsel %vm264, %v487, 0
    %v525 = vsel %vm264, %v488, 0
    %v528 = vsel %vm264, %v489, 0
    %v531 = vsel %vm264, %v490, 0
    %v534 = vsel %vm264, %v491, 0
    %v537 = vsel %vm264, %v492, 0
    %v540 = vsel %vm264, %v493, 0
    %542 = vmatpush.bf16.msra.mxu0 0
    %543 = vmatpush.bf16.msra.mxu0 0
    %544 = vmatpush.bf16.msra.mxu0 0
    %545 = vmatpush.bf16.msra.mxu0 0
    %546 = vmatpush.bf16.msra.mxu0 %v513
    %547 = vmatpush.bf16.msra.mxu0 %v512
    %548 = vmatpush.bf16.msra.mxu0 %v511
    %549 = vmatpush.bf16.msra.mxu0 %v510
    %550 = vmatmul.bf16.gmra.mxu0 %v519
    %v551 = vpop.f32.mrf.mxu0
    %v552 = vadd.f32 0.0, %v551
    %v553 = vpop.f32.mrf.mxu0
    %v554 = vadd.f32 0.0, %v553
    %555 = vmatmul.bf16.gmra.mxu0 %v522
    %v556 = vpop.f32.mrf.mxu0
    %v557 = vadd.f32 0.0, %v556
    %v558 = vpop.f32.mrf.mxu0
    %v559 = vadd.f32 0.0, %v558
    %560 = vmatmul.bf16.gmra.mxu0 %v525
    %v561 = vpop.f32.mrf.mxu0
    %v562 = vadd.f32 0.0, %v561
    %v563 = vpop.f32.mrf.mxu0
    %v564 = vadd.f32 0.0, %v563
    %565 = vmatmul.bf16.gmra.mxu0 %v528
    %v566 = vpop.f32.mrf.mxu0
    %v567 = vadd.f32 0.0, %v566
    %v568 = vpop.f32.mrf.mxu0
    %v569 = vadd.f32 0.0, %v568
    %570 = vmatmul.bf16.gmra.mxu0 %v531
    %v571 = vpop.f32.mrf.mxu0
    %v572 = vadd.f32 0.0, %v571
    %v573 = vpop.f32.mrf.mxu0
    %v574 = vadd.f32 0.0, %v573
    %575 = vmatmul.bf16.gmra.mxu0 %v534
    %v576 = vpop.f32.mrf.mxu0
    %v577 = vadd.f32 0.0, %v576
    %v578 = vpop.f32.mrf.mxu0
    %v579 = vadd.f32 0.0, %v578
    %580 = vmatmul.bf16.gmra.mxu0 %v537
    %v581 = vpop.f32.mrf.mxu0
    %v582 = vadd.f32 0.0, %v581
    %v583 = vpop.f32.mrf.mxu0
    %v584 = vadd.f32 0.0, %v583
    %585 = vmatmul.bf16.gmra.mxu0 %v540
    %v586 = vpop.f32.mrf.mxu0
    %v587 = vadd.f32 0.0, %v586
    %v588 = vpop.f32.mrf.mxu0
    %v589 = vadd.f32 0.0, %v588
    %590 = vdwg.mxu0
    %v591 = vsel %vm261, 0.0, -1e+30
    %v592 = vperm.slane %v591, 0
    %v593 = vlaneseq
    %v594 = vshrl.u32 %v593, 7
    %596 = vset.pattern.permute.xlu0 %v594
    %597 = vperm.xlu0 %596, %v592
    %v598 = vpop.permute.xlu0 %597
    %v599 = vperm.slane %v591, 1
    %v600 = vlaneseq
    %v601 = vshrl.u32 %v600, 7
    %603 = vset.pattern.permute.xlu0 %v601
    %604 = vperm.xlu0 %603, %v599
    %v605 = vpop.permute.xlu0 %604
    %v606 = vadd.f32 %v552, %v598
    %v607 = vadd.f32 %v554, %v598
    %v608 = vadd.f32 %v557, %v598
    %v609 = vadd.f32 %v559, %v598
    %v610 = vadd.f32 %v562, %v598
    %v611 = vadd.f32 %v564, %v598
    %v612 = vadd.f32 %v567, %v598
    %v613 = vadd.f32 %v569, %v598
    %v614 = vadd.f32 %v572, %v605
    %v615 = vadd.f32 %v574, %v605
    %v616 = vadd.f32 %v577, %v605
    %v617 = vadd.f32 %v579, %v605
    %v618 = vadd.f32 %v582, %v605
    %v619 = vadd.f32 %v584, %v605
    %v620 = vadd.f32 %v587, %v605
    %v621 = vadd.f32 %v589, %v605
    %v622 = vsel %vm264, %v606, -inf
    %v623 = vrot.slane %v622, 4
    %v624 = vmax.f32 %v622, %v623
    %v625 = vrot.slane %v624, 2
    %v626 = vmax.f32 %v624, %v625
    %v627 = vrot.slane %v626, 1
    %v628 = vmax.f32 %v626, %v627
    %v629 = vsel %vm264, %v607, -inf
    %v630 = vrot.slane %v629, 4
    %v631 = vmax.f32 %v629, %v630
    %v632 = vrot.slane %v631, 2
    %v633 = vmax.f32 %v631, %v632
    %v634 = vrot.slane %v633, 1
    %v635 = vmax.f32 %v633, %v634
    %v636 = vsel %vm264, %v608, -inf
    %v637 = vrot.slane %v636, 4
    %v638 = vmax.f32 %v636, %v637
    %v639 = vrot.slane %v638, 2
    %v640 = vmax.f32 %v638, %v639
    %v641 = vrot.slane %v640, 1
    %v642 = vmax.f32 %v640, %v641
    %v643 = vsel %vm264, %v609, -inf
    %v644 = vrot.slane %v643, 4
    %v645 = vmax.f32 %v643, %v644
    %v646 = vrot.slane %v645, 2
    %v647 = vmax.f32 %v645, %v646
    %v648 = vrot.slane %v647, 1
    %v649 = vmax.f32 %v647, %v648
    %v650 = vsel %vm264, %v610, -inf
    %v651 = vrot.slane %v650, 4
    %v652 = vmax.f32 %v650, %v651
    %v653 = vrot.slane %v652, 2
    %v654 = vmax.f32 %v652, %v653
    %v655 = vrot.slane %v654, 1
    %v656 = vmax.f32 %v654, %v655
    %v657 = vsel %vm264, %v611, -inf
    %v658 = vrot.slane %v657, 4
    %v659 = vmax.f32 %v657, %v658
    %v660 = vrot.slane %v659, 2
    %v661 = vmax.f32 %v659, %v660
    %v662 = vrot.slane %v661, 1
    %v663 = vmax.f32 %v661, %v662
    %v664 = vsel %vm264, %v612, -inf
    %v665 = vrot.slane %v664, 4
    %v666 = vmax.f32 %v664, %v665
    %v667 = vrot.slane %v666, 2
    %v668 = vmax.f32 %v666, %v667
    %v669 = vrot.slane %v668, 1
    %v670 = vmax.f32 %v668, %v669
    %v671 = vsel %vm264, %v613, -inf
    %v672 = vrot.slane %v671, 4
    %v673 = vmax.f32 %v671, %v672
    %v674 = vrot.slane %v673, 2
    %v675 = vmax.f32 %v673, %v674
    %v676 = vrot.slane %v675, 1
    %v677 = vmax.f32 %v675, %v676
    %v678 = vsel %vm264, %v614, -inf
    %v679 = vrot.slane %v678, 4
    %v680 = vmax.f32 %v678, %v679
    %v681 = vrot.slane %v680, 2
    %v682 = vmax.f32 %v680, %v681
    %v683 = vrot.slane %v682, 1
    %v684 = vmax.f32 %v682, %v683
    %v685 = vsel %vm264, %v615, -inf
    %v686 = vrot.slane %v685, 4
    %v687 = vmax.f32 %v685, %v686
    %v688 = vrot.slane %v687, 2
    %v689 = vmax.f32 %v687, %v688
    %v690 = vrot.slane %v689, 1
    %v691 = vmax.f32 %v689, %v690
    %v692 = vsel %vm264, %v616, -inf
    %v693 = vrot.slane %v692, 4
    %v694 = vmax.f32 %v692, %v693
    %v695 = vrot.slane %v694, 2
    %v696 = vmax.f32 %v694, %v695
    %v697 = vrot.slane %v696, 1
    %v698 = vmax.f32 %v696, %v697
    %v699 = vsel %vm264, %v617, -inf
    %v700 = vrot.slane %v699, 4
    %v701 = vmax.f32 %v699, %v700
    %v702 = vrot.slane %v701, 2
    %v703 = vmax.f32 %v701, %v702
    %v704 = vrot.slane %v703, 1
    %v705 = vmax.f32 %v703, %v704
    %v706 = vsel %vm264, %v618, -inf
    %v707 = vrot.slane %v706, 4
    %v708 = vmax.f32 %v706, %v707
    %v709 = vrot.slane %v708, 2
    %v710 = vmax.f32 %v708, %v709
    %v711 = vrot.slane %v710, 1
    %v712 = vmax.f32 %v710, %v711
    %v713 = vsel %vm264, %v619, -inf
    %v714 = vrot.slane %v713, 4
    %v715 = vmax.f32 %v713, %v714
    %v716 = vrot.slane %v715, 2
    %v717 = vmax.f32 %v715, %v716
    %v718 = vrot.slane %v717, 1
    %v719 = vmax.f32 %v717, %v718
    %v720 = vsel %vm264, %v620, -inf
    %v721 = vrot.slane %v720, 4
    %v722 = vmax.f32 %v720, %v721
    %v723 = vrot.slane %v722, 2
    %v724 = vmax.f32 %v722, %v723
    %v725 = vrot.slane %v724, 1
    %v726 = vmax.f32 %v724, %v725
    %v727 = vsel %vm264, %v621, -inf
    %v728 = vrot.slane %v727, 4
    %v729 = vmax.f32 %v727, %v728
    %v730 = vrot.slane %v729, 2
    %v731 = vmax.f32 %v729, %v730
    %v732 = vrot.slane %v731, 1
    %v733 = vmax.f32 %v731, %v732
    %v734 = vsub.f32 %v606, %v628
    %v735 = vsub.f32 %v607, %v635
    %v736 = vsub.f32 %v608, %v642
    %v737 = vsub.f32 %v609, %v649
    %v738 = vsub.f32 %v610, %v656
    %v739 = vsub.f32 %v611, %v663
    %v740 = vsub.f32 %v612, %v670
    %v741 = vsub.f32 %v613, %v677
    %v742 = vsub.f32 %v614, %v684
    %v743 = vsub.f32 %v615, %v691
    %v744 = vsub.f32 %v616, %v698
    %v745 = vsub.f32 %v617, %v705
    %v746 = vsub.f32 %v618, %v712
    %v747 = vsub.f32 %v619, %v719
    %v748 = vsub.f32 %v620, %v726
    %v749 = vsub.f32 %v621, %v733
    %v750 = vmul.f32 %v734, 1.442695
    %v751 = vpow.pop %v750
    %v752 = vmul.f32 %v735, 1.442695
    %v753 = vpow.pop %v752
    %v754 = vmul.f32 %v736, 1.442695
    %v755 = vpow.pop %v754
    %v756 = vmul.f32 %v737, 1.442695
    %v757 = vpow.pop %v756
    %v758 = vmul.f32 %v738, 1.442695
    %v759 = vpow.pop %v758
    %v760 = vmul.f32 %v739, 1.442695
    %v761 = vpow.pop %v760
    %v762 = vmul.f32 %v740, 1.442695
    %v763 = vpow.pop %v762
    %v764 = vmul.f32 %v741, 1.442695
    %v765 = vpow.pop %v764
    %v766 = vmul.f32 %v742, 1.442695
    %v767 = vpow.pop %v766
    %v768 = vmul.f32 %v743, 1.442695
    %v769 = vpow.pop %v768
    %v770 = vmul.f32 %v744, 1.442695
    %v771 = vpow.pop %v770
    %v772 = vmul.f32 %v745, 1.442695
    %v773 = vpow.pop %v772
    %v774 = vmul.f32 %v746, 1.442695
    %v775 = vpow.pop %v774
    %v776 = vmul.f32 %v747, 1.442695
    %v777 = vpow.pop %v776
    %v778 = vmul.f32 %v748, 1.442695
    %v779 = vpow.pop %v778
    %v780 = vmul.f32 %v749, 1.442695
    %v781 = vpow.pop %v780
    %v782 = vsel %vm264, %v751, 0.0
    %v783 = vrot.slane %v782, 4
    %v784 = vadd.f32 %v782, %v783
    %v785 = vrot.slane %v784, 2
    %v786 = vadd.f32 %v784, %v785
    %v787 = vrot.slane %v786, 1
    %v788 = vadd.f32 %v786, %v787
    %v789 = vsel %vm264, %v753, 0.0
    %v790 = vrot.slane %v789, 4
    %v791 = vadd.f32 %v789, %v790
    %v792 = vrot.slane %v791, 2
    %v793 = vadd.f32 %v791, %v792
    %v794 = vrot.slane %v793, 1
    %v795 = vadd.f32 %v793, %v794
    %v796 = vsel %vm264, %v755, 0.0
    %v797 = vrot.slane %v796, 4
    %v798 = vadd.f32 %v796, %v797
    %v799 = vrot.slane %v798, 2
    %v800 = vadd.f32 %v798, %v799
    %v801 = vrot.slane %v800, 1
    %v802 = vadd.f32 %v800, %v801
    %v803 = vsel %vm264, %v757, 0.0
    %v804 = vrot.slane %v803, 4
    %v805 = vadd.f32 %v803, %v804
    %v806 = vrot.slane %v805, 2
    %v807 = vadd.f32 %v805, %v806
    %v808 = vrot.slane %v807, 1
    %v809 = vadd.f32 %v807, %v808
    %v810 = vsel %vm264, %v759, 0.0
    %v811 = vrot.slane %v810, 4
    %v812 = vadd.f32 %v810, %v811
    %v813 = vrot.slane %v812, 2
    %v814 = vadd.f32 %v812, %v813
    %v815 = vrot.slane %v814, 1
    %v816 = vadd.f32 %v814, %v815
    %v817 = vsel %vm264, %v761, 0.0
    %v818 = vrot.slane %v817, 4
    %v819 = vadd.f32 %v817, %v818
    %v820 = vrot.slane %v819, 2
    %v821 = vadd.f32 %v819, %v820
    %v822 = vrot.slane %v821, 1
    %v823 = vadd.f32 %v821, %v822
    %v824 = vsel %vm264, %v763, 0.0
    %v825 = vrot.slane %v824, 4
    %v826 = vadd.f32 %v824, %v825
    %v827 = vrot.slane %v826, 2
    %v828 = vadd.f32 %v826, %v827
    %v829 = vrot.slane %v828, 1
    %v830 = vadd.f32 %v828, %v829
    %v831 = vsel %vm264, %v765, 0.0
    %v832 = vrot.slane %v831, 4
    %v833 = vadd.f32 %v831, %v832
    %v834 = vrot.slane %v833, 2
    %v835 = vadd.f32 %v833, %v834
    %v836 = vrot.slane %v835, 1
    %v837 = vadd.f32 %v835, %v836
    %v838 = vsel %vm264, %v767, 0.0
    %v839 = vrot.slane %v838, 4
    %v840 = vadd.f32 %v838, %v839
    %v841 = vrot.slane %v840, 2
    %v842 = vadd.f32 %v840, %v841
    %v843 = vrot.slane %v842, 1
    %v844 = vadd.f32 %v842, %v843
    %v845 = vsel %vm264, %v769, 0.0
    %v846 = vrot.slane %v845, 4
    %v847 = vadd.f32 %v845, %v846
    %v848 = vrot.slane %v847, 2
    %v849 = vadd.f32 %v847, %v848
    %v850 = vrot.slane %v849, 1
    %v851 = vadd.f32 %v849, %v850
    %v852 = vsel %vm264, %v771, 0.0
    %v853 = vrot.slane %v852, 4
    %v854 = vadd.f32 %v852, %v853
    %v855 = vrot.slane %v854, 2
    %v856 = vadd.f32 %v854, %v855
    %v857 = vrot.slane %v856, 1
    %v858 = vadd.f32 %v856, %v857
    %v859 = vsel %vm264, %v773, 0.0
    %v860 = vrot.slane %v859, 4
    %v861 = vadd.f32 %v859, %v860
    %v862 = vrot.slane %v861, 2
    %v863 = vadd.f32 %v861, %v862
    %v864 = vrot.slane %v863, 1
    %v865 = vadd.f32 %v863, %v864
    %v866 = vsel %vm264, %v775, 0.0
    %v867 = vrot.slane %v866, 4
    %v868 = vadd.f32 %v866, %v867
    %v869 = vrot.slane %v868, 2
    %v870 = vadd.f32 %v868, %v869
    %v871 = vrot.slane %v870, 1
    %v872 = vadd.f32 %v870, %v871
    %v873 = vsel %vm264, %v777, 0.0
    %v874 = vrot.slane %v873, 4
    %v875 = vadd.f32 %v873, %v874
    %v876 = vrot.slane %v875, 2
    %v877 = vadd.f32 %v875, %v876
    %v878 = vrot.slane %v877, 1
    %v879 = vadd.f32 %v877, %v878
    %v880 = vsel %vm264, %v779, 0.0
    %v881 = vrot.slane %v880, 4
    %v882 = vadd.f32 %v880, %v881
    %v883 = vrot.slane %v882, 2
    %v884 = vadd.f32 %v882, %v883
    %v885 = vrot.slane %v884, 1
    %v886 = vadd.f32 %v884, %v885
    %v887 = vsel %vm264, %v781, 0.0
    %v888 = vrot.slane %v887, 4
    %v889 = vadd.f32 %v887, %v888
    %v890 = vrot.slane %v889, 2
    %v891 = vadd.f32 %v889, %v890
    %v892 = vrot.slane %v891, 1
    %v893 = vadd.f32 %v891, %v892
    %v894 = vmul.f32 %v751, %v418
    %v895 = vmul.f32 %v753, %v418
    %v896 = vmul.f32 %v755, %v418
    %v897 = vmul.f32 %v757, %v418
    %v898 = vmul.f32 %v759, %v418
    %v899 = vmul.f32 %v761, %v418
    %v900 = vmul.f32 %v763, %v418
    %v901 = vmul.f32 %v765, %v418
    %v902 = vmul.f32 %v767, %v420
    %v903 = vmul.f32 %v769, %v420
    %v904 = vmul.f32 %v771, %v420
    %v905 = vmul.f32 %v773, %v420
    %v906 = vmul.f32 %v775, %v420
    %v907 = vmul.f32 %v777, %v420
    %v908 = vmul.f32 %v779, %v420
    %v909 = vmul.f32 %v781, %v420
    %v910 = vsel %vm264, %v894, 0.0
    %v911 = vrot.slane %v910, 4
    %v912 = vadd.f32 %v910, %v911
    %v913 = vrot.slane %v912, 2
    %v914 = vadd.f32 %v912, %v913
    %v915 = vrot.slane %v914, 1
    %v916 = vadd.f32 %v914, %v915
    %v917 = vsel %vm264, %v895, 0.0
    %v918 = vrot.slane %v917, 4
    %v919 = vadd.f32 %v917, %v918
    %v920 = vrot.slane %v919, 2
    %v921 = vadd.f32 %v919, %v920
    %v922 = vrot.slane %v921, 1
    %v923 = vadd.f32 %v921, %v922
    %v924 = vsel %vm264, %v896, 0.0
    %v925 = vrot.slane %v924, 4
    %v926 = vadd.f32 %v924, %v925
    %v927 = vrot.slane %v926, 2
    %v928 = vadd.f32 %v926, %v927
    %v929 = vrot.slane %v928, 1
    %v930 = vadd.f32 %v928, %v929
    %v931 = vsel %vm264, %v897, 0.0
    %v932 = vrot.slane %v931, 4
    %v933 = vadd.f32 %v931, %v932
    %v934 = vrot.slane %v933, 2
    %v935 = vadd.f32 %v933, %v934
    %v936 = vrot.slane %v935, 1
    %v937 = vadd.f32 %v935, %v936
    %v938 = vsel %vm264, %v898, 0.0
    %v939 = vrot.slane %v938, 4
    %v940 = vadd.f32 %v938, %v939
    %v941 = vrot.slane %v940, 2
    %v942 = vadd.f32 %v940, %v941
    %v943 = vrot.slane %v942, 1
    %v944 = vadd.f32 %v942, %v943
    %v945 = vsel %vm264, %v899, 0.0
    %v946 = vrot.slane %v945, 4
    %v947 = vadd.f32 %v945, %v946
    %v948 = vrot.slane %v947, 2
    %v949 = vadd.f32 %v947, %v948
    %v950 = vrot.slane %v949, 1
    %v951 = vadd.f32 %v949, %v950
    %v952 = vsel %vm264, %v900, 0.0
    %v953 = vrot.slane %v952, 4
    %v954 = vadd.f32 %v952, %v953
    %v955 = vrot.slane %v954, 2
    %v956 = vadd.f32 %v954, %v955
    %v957 = vrot.slane %v956, 1
    %v958 = vadd.f32 %v956, %v957
    %v959 = vsel %vm264, %v901, 0.0
    %v960 = vrot.slane %v959, 4
    %v961 = vadd.f32 %v959, %v960
    %v962 = vrot.slane %v961, 2
    %v963 = vadd.f32 %v961, %v962
    %v964 = vrot.slane %v963, 1
    %v965 = vadd.f32 %v963, %v964
    %v966 = vsel %vm264, %v902, 0.0
    %v967 = vrot.slane %v966, 4
    %v968 = vadd.f32 %v966, %v967
    %v969 = vrot.slane %v968, 2
    %v970 = vadd.f32 %v968, %v969
    %v971 = vrot.slane %v970, 1
    %v972 = vadd.f32 %v970, %v971
    %v973 = vsel %vm264, %v903, 0.0
    %v974 = vrot.slane %v973, 4
    %v975 = vadd.f32 %v973, %v974
    %v976 = vrot.slane %v975, 2
    %v977 = vadd.f32 %v975, %v976
    %v978 = vrot.slane %v977, 1
    %v979 = vadd.f32 %v977, %v978
    %v980 = vsel %vm264, %v904, 0.0
    %v981 = vrot.slane %v980, 4
    %v982 = vadd.f32 %v980, %v981
    %v983 = vrot.slane %v982, 2
    %v984 = vadd.f32 %v982, %v983
    %v985 = vrot.slane %v984, 1
    %v986 = vadd.f32 %v984, %v985
    %v987 = vsel %vm264, %v905, 0.0
    %v988 = vrot.slane %v987, 4
    %v989 = vadd.f32 %v987, %v988
    %v990 = vrot.slane %v989, 2
    %v991 = vadd.f32 %v989, %v990
    %v992 = vrot.slane %v991, 1
    %v993 = vadd.f32 %v991, %v992
    %v994 = vsel %vm264, %v906, 0.0
    %v995 = vrot.slane %v994, 4
    %v996 = vadd.f32 %v994, %v995
    %v997 = vrot.slane %v996, 2
    %v998 = vadd.f32 %v996, %v997
    %v999 = vrot.slane %v998, 1
    %v1000 = vadd.f32 %v998, %v999
    %v1001 = vsel %vm264, %v907, 0.0
    %v1002 = vrot.slane %v1001, 4
    %v1003 = vadd.f32 %v1001, %v1002
    %v1004 = vrot.slane %v1003, 2
    %v1005 = vadd.f32 %v1003, %v1004
    %v1006 = vrot.slane %v1005, 1
    %v1007 = vadd.f32 %v1005, %v1006
    %v1008 = vsel %vm264, %v908, 0.0
    %v1009 = vrot.slane %v1008, 4
    %v1010 = vadd.f32 %v1008, %v1009
    %v1011 = vrot.slane %v1010, 2
    %v1012 = vadd.f32 %v1010, %v1011
    %v1013 = vrot.slane %v1012, 1
    %v1014 = vadd.f32 %v1012, %v1013
    %v1015 = vsel %vm264, %v909, 0.0
    %v1016 = vrot.slane %v1015, 4
    %v1017 = vadd.f32 %v1015, %v1016
    %v1018 = vrot.slane %v1017, 2
    %v1019 = vadd.f32 %v1017, %v1018
    %v1020 = vrot.slane %v1019, 1
    %v1021 = vadd.f32 %v1019, %v1020
    %v1022 = vrcp.pop %v788
    %v1023 = vrcp.pop %v795
    %v1024 = vrcp.pop %v802
    %v1025 = vrcp.pop %v809
    %v1026 = vrcp.pop %v816
    %v1027 = vrcp.pop %v823
    %v1028 = vrcp.pop %v830
    %v1029 = vrcp.pop %v837
    %v1030 = vrcp.pop %v844
    %v1031 = vrcp.pop %v851
    %v1032 = vrcp.pop %v858
    %v1033 = vrcp.pop %v865
    %v1034 = vrcp.pop %v872
    %v1035 = vrcp.pop %v879
    %v1036 = vrcp.pop %v886
    %v1037 = vrcp.pop %v893
    %v1038 = vmul.f32 %v916, %v1022
    %v1039 = vmul.f32 %v923, %v1023
    %v1040 = vmul.f32 %v930, %v1024
    %v1041 = vmul.f32 %v937, %v1025
    %v1042 = vmul.f32 %v944, %v1026
    %v1043 = vmul.f32 %v951, %v1027
    %v1044 = vmul.f32 %v958, %v1028
    %v1045 = vmul.f32 %v965, %v1029
    %v1046 = vmul.f32 %v972, %v1030
    %v1047 = vmul.f32 %v979, %v1031
    %v1048 = vmul.f32 %v986, %v1032
    %v1049 = vmul.f32 %v993, %v1033
    %v1050 = vmul.f32 %v1000, %v1034
    %v1051 = vmul.f32 %v1007, %v1035
    %v1052 = vmul.f32 %v1014, %v1036
    %v1053 = vmul.f32 %v1021, %v1037
    %v1055 = vperm.slane %v234, 0
    %vm1073 = vcmask 1041409
    %v1074 = vsel %vm1073, %v1039, %v1038
    %vm1075 = vcmask 1042434
    %v1076 = vsel %vm1075, %v1040, %v1074
    %vm1077 = vcmask 1043459
    %v1078 = vsel %vm1077, %v1041, %v1076
    %vm1079 = vcmask 1044484
    %v1080 = vsel %vm1079, %v1042, %v1078
    %vm1081 = vcmask 1045509
    %v1082 = vsel %vm1081, %v1043, %v1080
    %vm1083 = vcmask 1046534
    %v1084 = vsel %vm1083, %v1044, %v1082
    %vm1085 = vcmask 1047559
    %v1086 = vsel %vm1085, %v1045, %v1084
    %v1087 = vsel %vm1073, %v1047, %v1046
    %v1088 = vsel %vm1075, %v1048, %v1087
    %v1089 = vsel %vm1077, %v1049, %v1088
    %v1090 = vsel %vm1079, %v1050, %v1089
    %v1091 = vsel %vm1081, %v1051, %v1090
    %v1092 = vsel %vm1083, %v1052, %v1091
    %v1093 = vsel %vm1085, %v1053, %v1092
    %v1094 = vsel %vm264, %v1086, 0
    %v1096 = vsel %vm264, %v1093, 0
    %1098 = vmatpush.msra.mxu0 0.0
    %1099 = vmatpush.msra.mxu0 0.0
    %1100 = vmatpush.msra.mxu0 0.0
    %1101 = vmatpush.msra.mxu0 0.0
    %1102 = vmatpush.msra.mxu0 0.0
    %1103 = vmatpush.msra.mxu0 0.0
    %1104 = vmatpush.msra.mxu0 0.0
    %1105 = vmatpush.msra.mxu0 0.0
    %1106 = vmatpush.msra.mxu0 %v233
    %1107 = vmatpush.msra.mxu0 %v232
    %1108 = vmatpush.msra.mxu0 %v231
    %1109 = vmatpush.msra.mxu0 %v230
    %1110 = vmatpush.msra.mxu0 %v229
    %1111 = vmatpush.msra.mxu0 %v228
    %1112 = vmatpush.msra.mxu0 %v227
    %1113 = vmatpush.msra.mxu0 %v226
    %1114 = vmatmul.f32.gmra.mxu0 %v1094
    %v1115 = vpop.f32.mrf.mxu0
    %v1116 = vadd.f32 %v1055, %v1115
    %1117 = vmatmul.f32.gmra.mxu0 %v1096
    %v1118 = vpop.f32.mrf.mxu0
    %v1119 = vadd.f32 %v1055, %v1118
    %1120 = vdwg.mxu0
    %v1121 = vadd.f32 %v293, %v1116
    %v1122 = vadd.f32 %v294, %v1119
    %v1123 = vsel %vm264, %v1121, 0.0
    %1124 = vadd.xlane.f32.xlu0 %v1123
    %v1125 = vpop.xlane.xlu0 %1124
    %v1126 = vsel %vm264, %v1122, 0.0
    %1127 = vadd.xlane.f32.xlu0 %v1126
    %v1128 = vpop.xlane.xlu0 %1127
    %v1129 = vrcp.pop 64.0
    %v1130 = vmul.f32 64.0, %v1129
    %v1131 = vsub.f32 1.0, %v1130
    %v1132 = vmul.f32 %v1129, %v1131
    %v1133 = vadd.f32 %v1129, %v1132
    %vm1134 = vweird.f32 %v1129
    %v1135 = vsel %vm1134, %v1129, %v1133
    %v1136 = vmul.f32 %v1125, %v1135
    %v1137 = vmul.f32 %v1128, %v1135
    %v1138 = vsub.f32 %v1121, %v1136
    %v1139 = vsub.f32 %v1122, %v1137
    %v1140 = vmul.f32 %v1138, %v1138
    %v1141 = vmul.f32 %v1139, %v1139
    %v1142 = vsel %vm264, %v1140, 0.0
    %1143 = vadd.xlane.f32.xlu0 %v1142
    %v1144 = vpop.xlane.xlu0 %1143
    %v1145 = vsel %vm264, %v1141, 0.0
    %1146 = vadd.xlane.f32.xlu0 %v1145
    %v1147 = vpop.xlane.xlu0 %1146
    %v1148 = vmul.f32 %v1144, %v1135
    %v1149 = vmul.f32 %v1147, %v1135
    %v1150 = vadd.f32 %v1148, 1e-05
    %v1151 = vadd.f32 %v1149, 1e-05
    %v1152 = vrsqrt.pop %v1150
    %v1153 = vmul.f32 %v1152, %v1150
    %v1154 = vmul.f32 %v1153, %v1152
    %v1155 = vmul.f32 0.5, %v1154
    %v1156 = vsub.f32 1.5, %v1155
    %v1157 = vmul.f32 %v1152, %v1156
    %vm1158 = vweird.f32 %v1150
    %vm1159 = vweird.f32 %v1152
    %vm1160 = vmor %vm1158, %vm1159
    %v1161 = vsel %vm1160, %v1152, %v1157
    %v1162 = vrsqrt.pop %v1151
    %v1163 = vmul.f32 %v1162, %v1151
    %v1164 = vmul.f32 %v1163, %v1162
    %v1165 = vmul.f32 0.5, %v1164
    %v1166 = vsub.f32 1.5, %v1165
    %v1167 = vmul.f32 %v1162, %v1166
    %vm1168 = vweird.f32 %v1151
    %vm1169 = vweird.f32 %v1162
    %vm1170 = vmor %vm1168, %vm1169
    %v1171 = vsel %vm1170, %v1162, %v1167
    %v1172 = vmul.f32 %v1138, %v1161
    %v1173 = vmul.f32 %v1139, %v1171
    %v1175 = vperm.slane %v235, 0
    %v1177 = vmul.f32 %v1172, %v1175
    %v1178 = vmul.f32 %v1173, %v1175
    %v1180 = vperm.slane %v236, 0
    %v1182 = vadd.f32 %v1177, %v1180
    %v1183 = vadd.f32 %v1178, %v1180
    %v1185 = vperm.slane %v237, 0
    %v1187 = vmul.f32 %v1182, %v1185
    %v1188 = vmul.f32 %v1183, %v1185
    %v1189 = vsel %vm264, %v1187, 0.0
    %1190 = vadd.xlane.f32.xlu0 %v1189
    %v1191 = vpop.xlane.xlu0 %1190
    %v1192 = vsel %vm264, %v1188, 0.0
    %1193 = vadd.xlane.f32.xlu0 %v1192
    %v1194 = vpop.xlane.xlu0 %1193
    %v1197 = vlaneseq
    %v1198 = vand.u32 %v1197, 127
    %v1199 = vperm.slane %v1191, %v1198
    %v1200 = vperm.slane %v1194, %v1198
    %v1201 = vsel %vm1073, %v1200, %v1199
    %v1203 = vsel %vm261, %v1201, -1e+09
    %vm1204 = vcmask 58368
    %v1205 = vsel %vm1204, %v1203, -inf
    %1206 = vmax.xlane.f32.xlu0 %v1205
    %v1207 = vpop.xlane.xlu0 %1206
    %v1208 = vsub.f32 %v1203, %v1207
    %v1209 = vmul.f32 %v1208, 1.442695
    %v1210 = vpow.pop %v1209
    %v1211 = vperm.slane %v1210, 0
    %v1212 = vlaneseq
    %v1213 = vshrl.u32 %v1212, 7
    %1215 = vset.pattern.permute.xlu0 %v1213
    %1216 = vperm.xlu0 %1215, %v1211
    %v1217 = vpop.permute.xlu0 %1216
    %v1218 = vperm.slane %v1210, 1
    %v1219 = vlaneseq
    %v1220 = vshrl.u32 %v1219, 7
    %1222 = vset.pattern.permute.xlu0 %v1220
    %1223 = vperm.xlu0 %1222, %v1218
    %v1224 = vpop.permute.xlu0 %1223
    %v1225 = vmul.f32 %v1182, %v1217
    %v1226 = vmul.f32 %v1183, %v1224
    %v1227 = vsel %vm264, %v1225, 0.0
    %v1228 = vrot.slane %v1227, 4
    %v1229 = vadd.f32 %v1227, %v1228
    %v1230 = vrot.slane %v1229, 2
    %v1231 = vadd.f32 %v1229, %v1230
    %v1232 = vrot.slane %v1231, 1
    %v1233 = vadd.f32 %v1231, %v1232
    %v1234 = vsel %vm264, %v1226, 0.0
    %v1235 = vrot.slane %v1234, 4
    %v1236 = vadd.f32 %v1234, %v1235
    %v1237 = vrot.slane %v1236, 2
    %v1238 = vadd.f32 %v1236, %v1237
    %v1239 = vrot.slane %v1238, 1
    %v1240 = vadd.f32 %v1238, %v1239
    %v1241 = vsel %vm1204, %v1210, 0.0
    %1242 = vadd.xlane.f32.xlu0 %v1241
    %v1243 = vpop.xlane.xlu0 %1242
    %v1244 = vrcp.pop %v1243
    %v1246 = vrot.slane %v1244, 1
    %v1249 = vmul.f32 %v1233, %v1244
    %v1250 = vmul.f32 %v1240, %v1246
    %v1252 = vperm.slane %v246, 0
    %v1256 = vrot.slane %v1250, 7
    %v1257 = vsel %vm1073, %v1256, %v1249
    %v1258 = vsel %vm264, %v1257, 0
    %1260 = vmatpush.msra.mxu0 0.0
    %1261 = vmatpush.msra.mxu0 0.0
    %1262 = vmatpush.msra.mxu0 0.0
    %1263 = vmatpush.msra.mxu0 0.0
    %1264 = vmatpush.msra.mxu0 0.0
    %1265 = vmatpush.msra.mxu0 0.0
    %1266 = vmatpush.msra.mxu0 0.0
    %1267 = vmatpush.msra.mxu0 0.0
    %1268 = vmatpush.msra.mxu0 %v245
    %1269 = vmatpush.msra.mxu0 %v244
    %1270 = vmatpush.msra.mxu0 %v243
    %1271 = vmatpush.msra.mxu0 %v242
    %1272 = vmatpush.msra.mxu0 %v241
    %1273 = vmatpush.msra.mxu0 %v240
    %1274 = vmatpush.msra.mxu0 %v239
    %1275 = vmatpush.msra.mxu0 %v238
    %1276 = vmatmul.f32.gmra.mxu0 %v1258
    %v1277 = vpop.f32.mrf.mxu0
    %v1278 = vadd.f32 %v1252, %v1277
    %1279 = vdwg.mxu0
    %v1280 = vmul.f32 %v1278, 0.5
    %v1281 = vmul.f32 %v1278, 0.70710677
    %v1282 = vmul.f32 %v1281, %v1281
    %v1283 = vmin.f32 16.0, %v1282
    %v1284 = vmul.f32 %v1283, 2.1237322e-06
    %v1285 = vadd.f32 %v1284, 0.00028619796
    %v1286 = vmul.f32 %v1283, %v1285
    %v1287 = vadd.f32 %v1286, 0.0036580483
    %v1288 = vmul.f32 %v1283, %v1287
    %v1289 = vadd.f32 %v1288, 0.05243302
    %v1290 = vmul.f32 %v1283, %v1289
    %v1291 = vadd.f32 %v1290, 0.18741608
    %v1292 = vmul.f32 %v1283, %v1291
    %v1293 = vadd.f32 %v1292, 1.1283791
    %v1294 = vmul.f32 %v1281, %v1293
    %v1295 = vmul.f32 %v1283, 3.8918573e-05
    %v1296 = vadd.f32 %v1295, 0.001143296
    %v1297 = vmul.f32 %v1283, %v1296
    %v1298 = vadd.f32 %v1297, 0.014752088
    %v1299 = vmul.f32 %v1283, %v1298
    %v1300 = vadd.f32 %v1299, 0.112945676
    %v1301 = vmul.f32 %v1283, %v1300
    %v1302 = vadd.f32 %v1301, 0.4994258
    %v1303 = vmul.f32 %v1283, %v1302
    %v1304 = vadd.f32 %v1303, 1.0
    %v1305 = vrcp.pop %v1304
    %v1306 = vmul.f32 %v1304, %v1305
    %v1307 = vsub.f32 1.0, %v1306
    %v1308 = vmul.f32 %v1305, %v1307
    %v1309 = vadd.f32 %v1305, %v1308
    %vm1310 = vweird.f32 %v1304
    %vm1311 = vweird.f32 %v1305
    %vm1312 = vmor %vm1310, %vm1311
    %v1313 = vsel %vm1312, %v1305, %v1309
    %v1314 = vand.u32 2147483647, %v1304
    %vm1315 = vcmp.eq.f32.partialorder %v1314, 8.507059e+37
    %v1316 = vand.u32 %v1304, 2147483648
    %v1317 = vor.u32 1.1754944e-38, %v1316
    %v1318 = vsel %vm1315, %v1317, %v1313
    %v1319 = vmul.f32 %v1294, %v1318
    %v1320 = vmin.f32 %v1319, 1.0
    %v1321 = vmax.f32 %v1320, -1.0
    %v1322 = vadd.f32 %v1321, 1.0
    %v1323 = vmul.f32 %v1280, %v1322
    %v1325 = vperm.slane %v255, 0
    %v1328 = vsel %vm264, %v1323, 0
    %1330 = vmatpush.msra.mxu0 0.0
    %1331 = vmatpush.msra.mxu0 0.0
    %1332 = vmatpush.msra.mxu0 0.0
    %1333 = vmatpush.msra.mxu0 0.0
    %1334 = vmatpush.msra.mxu0 0.0
    %1335 = vmatpush.msra.mxu0 0.0
    %1336 = vmatpush.msra.mxu0 0.0
    %1337 = vmatpush.msra.mxu0 0.0
    %1338 = vmatpush.msra.mxu0 %v254
    %1339 = vmatpush.msra.mxu0 %v253
    %1340 = vmatpush.msra.mxu0 %v252
    %1341 = vmatpush.msra.mxu0 %v251
    %1342 = vmatpush.msra.mxu0 %v250
    %1343 = vmatpush.msra.mxu0 %v249
    %1344 = vmatpush.msra.mxu0 %v248
    %1345 = vmatpush.msra.mxu0 %v247
    %1346 = vmatmul.f32.gmra.mxu0 %v1328
    %v1347 = vpop.f32.mrf.mxu0
    %v1348 = vadd.f32 %v1325, %v1347
    %1349 = vdwg.mxu0
    %v1350 = vmul.f32 %v1348, %v1348
    %vm1351 = vcmask 254976
    %v1352 = vsel %vm1351, %v1350, 0.0
    %1353 = vadd.xlane.f32.xlu0 %v1352
    %v1354 = vpop.xlane.xlu0 %1353
    %v1355 = vmax.f32 %v1354, 1e-24
    %v1356 = vrsqrt.pop %v1355
    %v1357 = vmul.f32 %v1356, %v1355
    %v1358 = vmul.f32 %v1357, %v1356
    %v1359 = vmul.f32 0.5, %v1358
    %v1360 = vsub.f32 1.5, %v1359
    %v1361 = vmul.f32 %v1356, %v1360
    %vm1362 = vweird.f32 %v1355
    %vm1363 = vweird.f32 %v1356
    %vm1364 = vmor %vm1362, %vm1363
    %v1365 = vsel %vm1364, %v1356, %v1361
    %v1366 = vmul.f32 %v1348, %v1365
    %1367 = vst.msk [vmem:[#allocation17] sm:$0x3] %vm1351, %v1366
    // Predicated region
    $region110: #{tpu_custom_call.1} parent=1 // pred_check
      _
    $region111: #{tpu_custom_call.1} parent=1 // pred_check_branch
      %1369 = sbr.rel (0) target = $region113
    $region112: #{tpu_custom_call.1} parent=1 // pred_region
      %1371 = vsyncadd [#allocation4], 0
      %s1373 = sshll.u32 [#allocation17], 4
      %s1374 = int_to_ptr.vmem [resolvable:$true] %s1373
      %s1375 = sshll.u32 %s18, 4
      %s1376 = int_to_ptr.hbm [resolvable:$true] %s1375
      %1378 = dma.vmem_to_hbm [thread:$0]  %s1374, 32, %s1376, [#allocation4]
    $region113: #{tpu_custom_call.1} parent=1 // pred_fallthru
      _
    // Predicated region
    $region114: #{tpu_custom_call.1} parent=1 // pred_check
      _
    $region115: #{tpu_custom_call.1} parent=1 // pred_check_branch
      %1380 = sbr.rel (0) target = $region117
    $region116: #{tpu_custom_call.1} parent=1 // pred_region
      %1382 = dma.done [#allocation4], 32
    $region117: #{tpu_custom_call.1} parent=1 // pred_fallthru
      _
    %1383 = vsyncpa [#allocation3], 1
    %1384 = vsyncpa [#allocation6], 1
    %1385 = vsyncpa [#allocation9], 1
    %1386 = vsyncpa [#allocation12], 1
    %1387 = vsyncpa [#allocation15], 1
    %1388 = vsyncpa [#allocation4], 1

</llo_original>
